<compile_context>
chip_gen: v7x
topology: tpu7x:2x2x1
jax: 0.10.0
libtpu: 0.0.40
codegen_flags: <defaults>
</compile_context>

<pallas_src>
import jax
import jax.numpy as jnp
from jax.experimental import pallas as pl
from jax.experimental.pallas import tpu as pltpu

LANE = 128            # feature dims are padded to a multiple of this


def _round_up(x, m):
    return ((x + m - 1) // m) * m


def _pad2(x, rows, cols, dtype):
    r, c = x.shape
    return jnp.pad(x, ((0, rows - r), (0, cols - c))).astype(dtype)


def _choose_tiles(n):
    """Pick (padded node count, dst-row tile tm, src-node tile tk)."""
    if n >= 4096:
        tm, tk = 512, 2048
    elif n >= 1024:
        tm, tk = 512, 1024
    elif n >= 512:
        tm, tk = 512, 512
    else:
        tm, tk = 256, 256
    np_ = _round_up(n, max(tm, tk))   # tm divides tk, so tm | np_ and tk | np_
    return np_, tm, tk


def _vmem_limit_bytes():
    """~3/4 of physical VMEM: <=48 MiB on v7x (64 MiB), up to 96 MiB on v5e/v6e (128 MiB)."""
    cap = 64 * 1024 * 1024
    try:
        info = pltpu.get_tpu_info()
        cap = int(getattr(info, "vmem_capacity_bytes", cap))
    except Exception:
        pass
    return max(32 * 1024 * 1024, min(cap * 3 // 4, 96 * 1024 * 1024))


# ----------------------------- Pallas kernels ------------------------------ #

def _sage_conv_kernel(a_ref, hs_ref, hd_ref, w_ref, b_ref, o_ref, acc_ref, deg_ref):
    """Fused SAGEConv('gcn') + ReLU, tiled over (dst rows, src nodes).

    A arrives as int8 (0/1) and is upcast to bf16 just before the MXU push.
    The in-degree is accumulated alongside the A@h reduction, so no extra pass
    over A is needed for the 'gcn' mean normalisation.
    """
    k = pl.program_id(1)

    @pl.when(k == 0)
    def _():
        acc_ref[...] = jnp.zeros_like(acc_ref)
        deg_ref[...] = jnp.zeros_like(deg_ref)

    a_i8 = a_ref[...]
    # neigh += A_tile @ h_tile   (bf16 operands, f32 MXU accumulation)
    acc_ref[...] += jnp.dot(a_i8.astype(jnp.bfloat16), hs_ref[...],
                            preferred_element_type=jnp.float32)
    # in-degree row sums (XLU reduce; free filler under the DMA bottleneck)
    deg_ref[...] += jnp.sum(a_i8.astype(jnp.float32), axis=1, keepdims=True)

    @pl.when(k == pl.num_programs(1) - 1)
    def _():
        inv = 1.0 / (deg_ref[...] + 1.0)
        h_agg = (acc_ref[...] + hd_ref[...].astype(jnp.float32)) * inv
        out = jnp.dot(h_agg.astype(w_ref.dtype), w_ref[...],
                      preferred_element_type=jnp.float32) + b_ref[...]
        o_ref[...] = jnp.maximum(out, 0.0).astype(o_ref.dtype)


def _sage_conv_linear_kernel(a_ref, hs_ref, hd_ref, wc_ref, bc_ref,
                             wl_ref, bl_ref, emb_ref, logit_ref, acc_ref, deg_ref):
    """Last SAGEConv('gcn') + ReLU fused with the final nn.Linear.

    Emits both emb = relu(conv(h)) (bf16 writeback) and logits = emb @ W_lin + b_lin (f32).
    Feature dims are small (padded to 128) so they are kept as full resident blocks.
    """
    k = pl.program_id(1)

    @pl.when(k == 0)
    def _():
        acc_ref[...] = jnp.zeros_like(acc_ref)
        deg_ref[...] = jnp.zeros_like(deg_ref)

    a_i8 = a_ref[...]
    acc_ref[...] += jnp.dot(a_i8.astype(jnp.bfloat16), hs_ref[...],
                            preferred_element_type=jnp.float32)
    deg_ref[...] += jnp.sum(a_i8.astype(jnp.float32), axis=1, keepdims=True)

    @pl.when(k == pl.num_programs(1) - 1)
    def _():
        inv = 1.0 / (deg_ref[...] + 1.0)
        h_agg = (acc_ref[...] + hd_ref[...].astype(jnp.float32)) * inv
        emb = jnp.maximum(
            jnp.dot(h_agg.astype(wc_ref.dtype), wc_ref[...],
                    preferred_element_type=jnp.float32) + bc_ref[...], 0.0)
        emb_ref[...] = emb.astype(emb_ref.dtype)
        logit_ref[...] = (jnp.dot(emb.astype(wl_ref.dtype), wl_ref[...],
                                  preferred_element_type=jnp.float32)
                          + bl_ref[...]).astype(logit_ref.dtype)


# ------------------------------ JAX wrappers ------------------------------- #

def sage_conv(adj_i8, h, w, b, *, tm, tk, vmem_limit):
    """One SAGEConv('gcn') + ReLU layer, tiled (dst rows, src nodes); W kept full-width."""
    np_ = adj_i8.shape[0]
    fin = h.shape[1]
    fout = w.shape[1]
    grid = (np_ // tm, np_ // tk)
    flops = 2 * np_ * np_ * fin + 2 * np_ * fin * fout + np_ * np_
    bytes_accessed = (np_ * np_ * 1                       # A (int8)
                      + (np_ // tm) * np_ * fin * 2       # h re-streamed per row tile
                      + np_ * fin * 2                     # self-term rows
                      + fin * fout * 2 + fout * 4         # W, bias (resident)
                      + np_ * fout * 2)                   # out (bf16)
    # TODO(synk): sweep pipeline_mode=pl.Buffered(3) on the A spec if exposed DMA remains.
    return pl.pallas_call(
        _sage_conv_kernel,
        out_shape=jax.ShapeDtypeStruct((np_, fout), jnp.bfloat16),
        grid_spec=pltpu.PrefetchScalarGridSpec(
            num_scalar_prefetch=0,
            grid=grid,
            in_specs=[
                pl.BlockSpec((tm, tk), lambda i, k: (i, k)),     # A  [dst, src] int8
                pl.BlockSpec((tk, fin), lambda i, k: (k, 0)),    # h  (src rows)
                pl.BlockSpec((tm, fin), lambda i, k: (i, 0)),    # h  (dst rows, self term)
                pl.BlockSpec((fin, fout), lambda i, k: (0, 0)),  # W_neigh (full width)
                pl.BlockSpec((1, fout), lambda i, k: (0, 0)),    # bias
            ],
            out_specs=pl.BlockSpec((tm, fout), lambda i, k: (i, 0)),
            scratch_shapes=[pltpu.VMEM((tm, fin), jnp.float32),  # A@h accumulator
                            pltpu.VMEM((tm, 1), jnp.float32)],   # in-degree accumulator
        ),
        compiler_params=pltpu.CompilerParams(
            dimension_semantics=("parallel", "arbitrary"),
            vmem_limit_bytes=vmem_limit,
        ),
        cost_estimate=pl.CostEstimate(
            flops=flops, transcendentals=0, bytes_accessed=bytes_accessed),
    )(adj_i8, h, h, w, b)


def sage_conv_linear(adj_i8, h, wc, bc, wl, bl, *, tm, tk, vmem_limit):
    """Last SAGEConv('gcn')+ReLU fused with the final Linear -> (emb bf16, logits f32)."""
    np_ = adj_i8.shape[0]
    fin = h.shape[1]
    fh = wc.shape[1]
    fc = wl.shape[1]
    grid = (np_ // tm, np_ // tk)
    flops = 2 * np_ * np_ * fin + 2 * np_ * fin * fh + 2 * np_ * fh * fc + np_ * np_
    bytes_accessed = (np_ * np_ * 1
                      + (np_ // tm) * np_ * fin * 2
                      + np_ * fin * 2
                      + wc.size * 2 + wl.size * 2 + (fh + fc) * 4
                      + np_ * fh * 2 + np_ * fc * 4)
    return pl.pallas_call(
        _sage_conv_linear_kernel,
        out_shape=(jax.ShapeDtypeStruct((np_, fh), jnp.bfloat16),   # emb
                   jax.ShapeDtypeStruct((np_, fc), jnp.float32)),   # logits
        grid_spec=pltpu.PrefetchScalarGridSpec(
            num_scalar_prefetch=0,
            grid=grid,
            in_specs=[
                pl.BlockSpec((tm, tk), lambda i, k: (i, k)),        # A (int8)
                pl.BlockSpec((tk, fin), lambda i, k: (k, 0)),       # h (src rows)
                pl.BlockSpec((tm, fin), lambda i, k: (i, 0)),       # h (dst rows)
                pl.BlockSpec((fin, fh), lambda i, k: (0, 0)),       # W_conv
                pl.BlockSpec((1, fh), lambda i, k: (0, 0)),         # b_conv
                pl.BlockSpec((fh, fc), lambda i, k: (0, 0)),        # W_lin
                pl.BlockSpec((1, fc), lambda i, k: (0, 0)),         # b_lin
            ],
            out_specs=(pl.BlockSpec((tm, fh), lambda i, k: (i, 0)),
                       pl.BlockSpec((tm, fc), lambda i, k: (i, 0))),
            scratch_shapes=[pltpu.VMEM((tm, fin), jnp.float32),
                            pltpu.VMEM((tm, 1), jnp.float32)],
        ),
        compiler_params=pltpu.CompilerParams(
            dimension_semantics=("parallel", "arbitrary"),
            vmem_limit_bytes=vmem_limit,
        ),
        cost_estimate=pl.CostEstimate(
            flops=flops, transcendentals=0, bytes_accessed=bytes_accessed),
    )(adj_i8, h, h, wc, bc, wl, bl)


# --------------------------------- model ----------------------------------- #

class SAGEPallas:
    """JAX/Pallas port of the PyTorch SAGE module's forward pass (eval mode)."""

    def __init__(self, in_feats, n_hidden, n_classes, n_layers, key):
        assert n_layers >= 2
        self.in_feats = in_feats
        self.n_hidden = n_hidden
        self.n_classes = n_classes
        self.n_layers = n_layers

        dims = [in_feats] + [n_hidden] * (n_layers - 1)
        keys = jax.random.split(key, 2 * n_layers)
        self.conv_params = []   # logical (unpadded) f32 params
        for i in range(n_layers - 1):
            fin, fout = dims[i], dims[i + 1]
            w = jax.random.normal(keys[2 * i], (fin, fout), jnp.float32) / jnp.sqrt(fin)
            b = jax.random.normal(keys[2 * i + 1], (1, fout), jnp.float32) * 0.01
            self.conv_params.append((w, b))
        w = jax.random.normal(keys[-2], (n_hidden, n_classes), jnp.float32) / jnp.sqrt(n_hidden)
        b = jax.random.normal(keys[-1], (1, n_classes), jnp.float32) * 0.01
        self.lin_params = (w, b)

    def forward(self, adj, x):
        n = adj.shape[0]
        np_, tm, tk = _choose_tiles(n)
        vmem_limit = _vmem_limit_bytes()

        fh_p = _round_up(self.n_hidden, LANE)
        fc_p = _round_up(self.n_classes, LANE)
        fin0_p = _round_up(self.in_feats, LANE)

        # Pad graph + features once.  A is a 0/1 mask, so int8 storage is exact;
        # the kernels upcast A -> bf16 only for the MXU push.
        # NOTE: this quantization is only valid for unweighted adjacency.
        adj_i8 = _pad2(adj, np_, np_, jnp.int8)
        h = _pad2(x, np_, fin0_p, jnp.bfloat16)

        # middle SAGEConv layers (all but the last one); degree is accumulated
        # in-kernel alongside the aggregation, so there is no separate degree pass.
        for i in range(self.n_layers - 2):
            w, b = self.conv_params[i]
            fin_p = _round_up(w.shape[0], LANE)
            w_p = _pad2(w, fin_p, fh_p, jnp.bfloat16)
            b_p = _pad2(b, 1, fh_p, jnp.float32)
            h = sage_conv(adj_i8, h, w_p, b_p, tm=tm, tk=tk, vmem_limit=vmem_limit)

        # last SAGEConv fused with the final nn.Linear (emits both emb and logits)
        wc, bc = self.conv_params[-1]
        finl_p = _round_up(wc.shape[0], LANE)
        wc_p = _pad2(wc, finl_p, fh_p, jnp.bfloat16)
        bc_p = _pad2(bc, 1, fh_p, jnp.float32)
        wl, bl = self.lin_params
        wl_p = _pad2(wl, fh_p, fc_p, jnp.bfloat16)
        bl_p = _pad2(bl, 1, fc_p, jnp.float32)
        emb_p, logits_p = sage_conv_linear(adj_i8, h, wc_p, bc_p, wl_p, bl_p,
                                           tm=tm, tk=tk, vmem_limit=vmem_limit)

        logits = logits_p[:n, :self.n_classes]
        emb = emb_p[:n, :self.n_hidden].astype(jnp.float32)
        return logits, emb


# ------------------------------ reference ---------------------------------- #

def sage_reference(adj, x, conv_params, lin_params):
    """Pure-JAX f32 reference of the SAGE forward pass."""
    deg = jnp.sum(adj, axis=1, keepdims=True)
    h = x
    emb = x
    for w, b in conv_params:
        h_agg = (adj @ h + h) / (deg + 1.0)
        emb = jnp.maximum(h_agg @ w + b, 0.0)
        h = emb                                   # eval-mode dropout == identity
    wl, bl = lin_params
    return h @ wl + bl, emb


# --------------------------------- main ------------------------------------ #

if __name__ == "__main__":
    key = jax.random.PRNGKey(0)
    k_adj, k_x, k_params = jax.random.split(key, 3)

    N = 16
    in_feats = 32
    n_hidden = 64
    n_classes = 8
    n_layers = 3        # 2 x SAGEConv('gcn') + 1 x Linear

    # synthetic dense adjacency (no self loops; 'gcn' aggregator adds the self term)
    adj = (jax.random.uniform(k_adj, (N, N)) < 0.3).astype(jnp.float32)
    adj = adj * (1.0 - jnp.eye(N, dtype=jnp.float32))
    x = jax.random.normal(k_x, (N, in_feats), jnp.float32)

    model = SAGEPallas(in_feats, n_hidden, n_classes, n_layers, k_params)
    logits, emb = model.forward(adj, x)
    jax.block_until_ready((logits, emb))

    assert logits.shape == (N, n_classes)
    assert emb.shape == (N, n_hidden)

    ref_logits, ref_emb = sage_reference(adj, x, model.conv_params, model.lin_params)
    assert jnp.allclose(logits, ref_logits, atol=5e-2, rtol=0.0), \
        float(jnp.abs(logits - ref_logits).max())
    assert jnp.allclose(emb, ref_emb, atol=5e-2, rtol=0.0), \
        float(jnp.abs(emb - ref_emb).max())

    print("KERNEL_OK")
</pallas_src>

<mosaic_0001>
module attributes {stable_mosaic.version = 11 : i64} {
  func.func @_sage_conv_kernel(%arg0: i32, %arg1: i32, %arg2: memref<256x256xi8, #tpu.memory_space<vmem>>, %arg3: memref<256x128xbf16, #tpu.memory_space<vmem>>, %arg4: memref<256x128xbf16, #tpu.memory_space<vmem>>, %arg5: memref<128x128xbf16, #tpu.memory_space<vmem>>, %arg6: memref<1x128xf32, #tpu.memory_space<vmem>>, %arg7: memref<256x128xbf16, #tpu.memory_space<vmem>>, %arg8: memref<256x128xf32, #tpu.memory_space<vmem>>, %arg9: memref<256x1xf32, #tpu.memory_space<vmem>>) attributes {dimension_semantics = [#tpu.dimension_semantics<parallel>, #tpu.dimension_semantics<arbitrary>], iteration_bounds = array<i64: 1, 1>, scalar_prefetch = 0 : i64, scratch_operands = 2 : i64, tpu.core_type = #tpu.core_type<tc>, window_params = [{transform_indices = @transform_0, window_bounds = array<i64: 256, 256>}, {transform_indices = @transform_1, window_bounds = array<i64: 256, 128>}, {transform_indices = @transform_2, window_bounds = array<i64: 256, 128>}, {pipeline_mode = #tpu.pipeline_mode<synchronous>, transform_indices = @transform_3, window_bounds = array<i64: 128, 128>}, {pipeline_mode = #tpu.pipeline_mode<synchronous>, transform_indices = @transform_4, window_bounds = array<i64: 1, 128>}, {transform_indices = @transform_5, window_bounds = array<i64: 256, 128>}]} {
    %c0_i32 = arith.constant 0 : i32
    %0 = arith.cmpi eq, %arg1, %c0_i32 : i32
    %1 = arith.extui %0 : i1 to i32
    %c0_i32_0 = arith.constant 0 : i32
    %2 = arith.cmpi ne, %1, %c0_i32_0 : i32
    scf.if %2 {
      %cst_15 = arith.constant 0.000000e+00 : f32
      %19 = vector.broadcast %cst_15 : f32 to vector<256x128xf32>
      %c0_16 = arith.constant 0 : index
      %c0_17 = arith.constant 0 : index
      %20 = vector.load %arg8[%c0_16, %c0_17] : memref<256x128xf32, #tpu.memory_space<vmem>>, vector<256x128xf32>
      tpu.vector_store %arg8[%c0_16, %c0_17], %19 {strides = array<i32>} : memref<256x128xf32, #tpu.memory_space<vmem>>, vector<256x128xf32>,
      %cst_18 = arith.constant 0.000000e+00 : f32
      %21 = vector.broadcast %cst_18 : f32 to vector<256x1xf32>
      %c0_19 = arith.constant 0 : index
      %c0_20 = arith.constant 0 : index
      %22 = vector.load %arg9[%c0_19, %c0_20] : memref<256x1xf32, #tpu.memory_space<vmem>>, vector<256x1xf32>
      tpu.vector_store %arg9[%c0_19, %c0_20], %21 {strides = array<i32>} : memref<256x1xf32, #tpu.memory_space<vmem>>, vector<256x1xf32>,
    } else {
    }
    %c0 = arith.constant 0 : index
    %c0_1 = arith.constant 0 : index
    %3 = vector.load %arg2[%c0, %c0_1] : memref<256x256xi8, #tpu.memory_space<vmem>>, vector<256x256xi8>
    %c0_2 = arith.constant 0 : index
    %c0_3 = arith.constant 0 : index
    %4 = vector.load %arg8[%c0_2, %c0_3] : memref<256x128xf32, #tpu.memory_space<vmem>>, vector<256x128xf32>
    %5 = arith.sitofp %3 : vector<256x256xi8> to vector<256x256xbf16>
    %c0_4 = arith.constant 0 : index
    %c0_5 = arith.constant 0 : index
    %6 = vector.load %arg3[%c0_4, %c0_5] : memref<256x128xbf16, #tpu.memory_space<vmem>>, vector<256x128xbf16>
    %cst = arith.constant dense<0.000000e+00> : vector<256x128xf32>
    %7 = tpu.matmul %5, %6, %cst {dimension_numbers = #tpu.dot_dimension_numbers<[1], [0], [0], [1], [0, 0, 1, 1], [], []>} : vector<256x256xbf16>, vector<256x128xbf16>, vector<256x128xf32> -> vector<256x128xf32>
    %8 = arith.addf %4, %7 : vector<256x128xf32>
    %c0_6 = arith.constant 0 : index
    %c0_7 = arith.constant 0 : index
    %9 = vector.load %arg8[%c0_6, %c0_7] : memref<256x128xf32, #tpu.memory_space<vmem>>, vector<256x128xf32>
    tpu.vector_store %arg8[%c0_6, %c0_7], %8 {strides = array<i32>} : memref<256x128xf32, #tpu.memory_space<vmem>>, vector<256x128xf32>,
    %c0_8 = arith.constant 0 : index
    %c0_9 = arith.constant 0 : index
    %10 = vector.load %arg9[%c0_8, %c0_9] : memref<256x1xf32, #tpu.memory_space<vmem>>, vector<256x1xf32>
    %11 = arith.sitofp %3 : vector<256x256xi8> to vector<256x256xf32>
    %cst_10 = arith.constant dense<0.000000e+00> : vector<256xf32>
    %12 = vector.multi_reduction <add>, %11, %cst_10 [1] : vector<256x256xf32> to vector<256xf32>
    %13 = vector.shape_cast %12 : vector<256xf32> to vector<256x1xf32>
    %14 = arith.addf %10, %13 : vector<256x1xf32>
    %c0_11 = arith.constant 0 : index
    %c0_12 = arith.constant 0 : index
    %15 = vector.load %arg9[%c0_11, %c0_12] : memref<256x1xf32, #tpu.memory_space<vmem>>, vector<256x1xf32>
    tpu.vector_store %arg9[%c0_11, %c0_12], %14 {strides = array<i32>} : memref<256x1xf32, #tpu.memory_space<vmem>>, vector<256x1xf32>,
    %c0_i32_13 = arith.constant 0 : i32
    %16 = arith.cmpi eq, %arg1, %c0_i32_13 : i32
    %17 = arith.extui %16 : i1 to i32
    %c0_i32_14 = arith.constant 0 : i32
    %18 = arith.cmpi ne, %17, %c0_i32_14 : i32
    scf.if %18 {
      %c0_15 = arith.constant 0 : index
      %c0_16 = arith.constant 0 : index
      %19 = vector.load %arg9[%c0_15, %c0_16] : memref<256x1xf32, #tpu.memory_space<vmem>>, vector<256x1xf32>
      %cst_17 = arith.constant 1.000000e+00 : f32
      %20 = vector.broadcast %cst_17 : f32 to vector<256x1xf32>
      %21 = arith.addf %19, %20 : vector<256x1xf32>
      %cst_18 = arith.constant 1.000000e+00 : f32
      %22 = vector.broadcast %cst_18 : f32 to vector<256x1xf32>
      %23 = arith.divf %22, %21 : vector<256x1xf32>
      %c0_19 = arith.constant 0 : index
      %c0_20 = arith.constant 0 : index
      %24 = vector.load %arg8[%c0_19, %c0_20] : memref<256x128xf32, #tpu.memory_space<vmem>>, vector<256x128xf32>
      %c0_21 = arith.constant 0 : index
      %c0_22 = arith.constant 0 : index
      %25 = vector.load %arg4[%c0_21, %c0_22] : memref<256x128xbf16, #tpu.memory_space<vmem>>, vector<256x128xbf16>
      %26 = arith.extf %25 : vector<256x128xbf16> to vector<256x128xf32>
      %27 = arith.addf %24, %26 : vector<256x128xf32>
      %28 = vector.broadcast %23 : vector<256x1xf32> to vector<256x128xf32>
      %29 = arith.mulf %27, %28 : vector<256x128xf32>
      %30 = arith.truncf %29 : vector<256x128xf32> to vector<256x128xbf16>
      %c0_23 = arith.constant 0 : index
      %c0_24 = arith.constant 0 : index
      %31 = vector.load %arg5[%c0_23, %c0_24] : memref<128x128xbf16, #tpu.memory_space<vmem>>, vector<128x128xbf16>
      %cst_25 = arith.constant dense<0.000000e+00> : vector<256x128xf32>
      %32 = tpu.matmul %30, %31, %cst_25 {dimension_numbers = #tpu.dot_dimension_numbers<[1], [0], [0], [1], [0, 0, 1, 1], [], []>} : vector<256x128xbf16>, vector<128x128xbf16>, vector<256x128xf32> -> vector<256x128xf32>
      %c0_26 = arith.constant 0 : index
      %c0_27 = arith.constant 0 : index
      %33 = vector.load %arg6[%c0_26, %c0_27] : memref<1x128xf32, #tpu.memory_space<vmem>>, vector<1x128xf32>
      %34 = vector.broadcast %33 : vector<1x128xf32> to vector<256x128xf32>
      %35 = arith.addf %32, %34 : vector<256x128xf32>
      %cst_28 = arith.constant 0.000000e+00 : f32
      %36 = vector.broadcast %cst_28 : f32 to vector<256x128xf32>
      %37 = arith.maximumf %35, %36 : vector<256x128xf32>
      %38 = arith.truncf %37 : vector<256x128xf32> to vector<256x128xbf16>
      %c0_29 = arith.constant 0 : index
      %c0_30 = arith.constant 0 : index
      %39 = vector.load %arg7[%c0_29, %c0_30] : memref<256x128xbf16, #tpu.memory_space<vmem>>, vector<256x128xbf16>
      tpu.vector_store %arg7[%c0_29, %c0_30], %38 {strides = array<i32>} : memref<256x128xbf16, #tpu.memory_space<vmem>>, vector<256x128xbf16>,
    } else {
    }
    return
  }
  func.func @transform_0(%arg0: i32, %arg1: i32) -> (i32, i32) {
    %c0_i32 = arith.constant 0 : i32
    return %arg0, %arg1 : i32, i32
  }
  func.func @transform_1(%arg0: i32, %arg1: i32) -> (i32, i32) {
    %c0_i32 = arith.constant 0 : i32
    %c0_i32_0 = arith.constant 0 : i32
    return %arg1, %c0_i32 : i32, i32
  }
  func.func @transform_2(%arg0: i32, %arg1: i32) -> (i32, i32) {
    %c0_i32 = arith.constant 0 : i32
    %c0_i32_0 = arith.constant 0 : i32
    return %arg0, %c0_i32 : i32, i32
  }
  func.func @transform_3(%arg0: i32, %arg1: i32) -> (i32, i32) {
    %c0_i32 = arith.constant 0 : i32
    %c0_i32_0 = arith.constant 0 : i32
    %c0_i32_1 = arith.constant 0 : i32
    return %c0_i32, %c0_i32_0 : i32, i32
  }
  func.func @transform_4(%arg0: i32, %arg1: i32) -> (i32, i32) {
    %c0_i32 = arith.constant 0 : i32
    %c0_i32_0 = arith.constant 0 : i32
    %c0_i32_1 = arith.constant 0 : i32
    return %c0_i32, %c0_i32_0 : i32, i32
  }
  func.func @transform_5(%arg0: i32, %arg1: i32) -> (i32, i32) {
    %c0_i32 = arith.constant 0 : i32
    %c0_i32_0 = arith.constant 0 : i32
    return %arg0, %c0_i32 : i32, i32
  }
}

</mosaic_0001>

<llo_original>
// kernel: tpu_custom_call.1
$region0: #{tpu_custom_call.1}
  #allocation0 [shape = 'u32[]', space=smem, size = 0x4, offset = 0x4, fixed_abs, tag = 'smem constant byte address 0x4 - core index']
  #allocation1 [shape = 'u32[144,128]{1,0:T(1,128)}', space=vmem, size = 0x12000, scoped, tag = 'internal scratch']
  #allocation2 [shape = 'f32[256,128]{1,0:T(8,128)}', space=vmem, size = 0x20000, scoped, tag = 'scratch operand']
  #allocation3 [shape = 'f32[256,1]{1,0:T(8,128)}', space=vmem, size = 0x20000, scoped, tag = 'scratch operand']
  %s0 = inlined_call_operand.hbm [shape: s8[256,256], index: 0, kind: input, shape index: {}]
  %s1 = inlined_call_operand.hbm [shape: bf16[256,128], index: 1, kind: input, shape index: {}]
  %s2 = inlined_call_operand.hbm [shape: bf16[256,128], index: 2, kind: input, shape index: {}]
  %s3 = inlined_call_operand.hbm [shape: bf16[128,128], index: 3, kind: input, shape index: {}]
  %s4 = inlined_call_operand.vmem [shape: f32[1,128], index: 4, kind: input, shape index: {}]
  %s5 = inlined_call_operand.hbm [shape: bf16[256,128], index: 5, kind: output, shape index: {}]
  %s6 = sld [smem:[#allocation0]]
  $region54: #{tpu_custom_call.1} parent=0
    _
  %s8 = ssub.s32 1, %s6
  %s9 = scalar_select 0, %s8, %s6
  $region1: #{tpu_custom_call.1} parent=0
    #allocation4 [shape = 'u8[65536]{0}', space=vmem, size = 0x10000, scoped, tag = 'input window, operand 0, single buffered']
    #allocation5 [shape = 's32[1]{0}', space=sflag, size = 0x4, scoped, tag = 'scoped memory for tpu_custom_call.1']
    #allocation6 [shape = 's32[1]{0}', space=sflag, size = 0x4, scoped, tag = 'scoped memory for tpu_custom_call.1']
    #allocation7 [shape = 'u8[65536]{0}', space=vmem, size = 0x10000, scoped, tag = 'input window, operand 1, single buffered']
    #allocation8 [shape = 's32[1]{0}', space=sflag, size = 0x4, scoped, tag = 'scoped memory for tpu_custom_call.1']
    #allocation9 [shape = 'u8[65536]{0}', space=vmem, size = 0x10000, scoped, tag = 'input window, operand 2, single buffered']
    #allocation10 [shape = 'u8[32768]{0}', space=vmem, size = 0x8000, scoped, tag = 'input window, operand 3, single buffered']
    #allocation11 [shape = 's32[1]{0}', space=sflag, size = 0x4, scoped, tag = 'scoped memory for tpu_custom_call.1']
    #allocation12 [shape = 'u8[65536]{0}', space=vmem, size = 0x10000, scoped, tag = 'output window, operand 0, single buffered']
    %10 = vsyncpa [#allocation5], 0
    %11 = vsyncpa [#allocation8], 0
    %12 = vsyncpa [#allocation11], 0
    %13 = vsyncpa [#allocation6], 0
    // Predicated region
    $region2: #{tpu_custom_call.1} parent=1 // pred_check
      _
    $region3: #{tpu_custom_call.1} parent=1 // pred_check_branch
      %15 = sbr.rel (0) target = $region5
    $region4: #{tpu_custom_call.1} parent=1 // pred_region
      %s17 = ssub.s32 2048, 2048
      %18 = vsyncadd [#allocation5], %s17
      %s19 = sshll.u32 [#allocation4], 4
      %s20 = int_to_ptr.vmem [resolvable:$true] %s19
      %25 = dma.hbm_to_vmem [thread:$0]  %s0, 2048, %s20, [#allocation5], 256, 256, 16
    $region5: #{tpu_custom_call.1} parent=1 // pred_fallthru
      _
    // Predicated region
    $region6: #{tpu_custom_call.1} parent=1 // pred_check
      _
    $region7: #{tpu_custom_call.1} parent=1 // pred_check_branch
      %27 = sbr.rel (0) target = $region9
    $region8: #{tpu_custom_call.1} parent=1 // pred_region
      %s29 = ssub.s32 2048, 2048
      %30 = vsyncadd [#allocation8], %s29
      %s31 = sshll.u32 [#allocation7], 4
      %s32 = int_to_ptr.vmem [resolvable:$true] %s31
      %37 = dma.hbm_to_vmem [thread:$0]  %s1, 2048, %s32, [#allocation8], 64, 64, 4
    $region9: #{tpu_custom_call.1} parent=1 // pred_fallthru
      _
    // Predicated region
    $region10: #{tpu_custom_call.1} parent=1 // pred_check
      _
    $region11: #{tpu_custom_call.1} parent=1 // pred_check_branch
      %39 = sbr.rel (0) target = $region13
    $region12: #{tpu_custom_call.1} parent=1 // pred_region
      %s41 = ssub.s32 2048, 2048
      %42 = vsyncadd [#allocation8], %s41
      %s43 = sshll.u32 [#allocation9], 4
      %s44 = int_to_ptr.vmem [resolvable:$true] %s43
      %49 = dma.hbm_to_vmem [thread:$0]  %s2, 2048, %s44, [#allocation8], 64, 64, 4
    $region13: #{tpu_custom_call.1} parent=1 // pred_fallthru
      _
    // Predicated region
    $region14: #{tpu_custom_call.1} parent=1 // pred_check
      _
    $region15: #{tpu_custom_call.1} parent=1 // pred_check_branch
      %51 = sbr.rel (0) target = $region17
    $region16: #{tpu_custom_call.1} parent=1 // pred_region
      %s53 = ssub.s32 1024, 1024
      %54 = vsyncadd [#allocation11], %s53
      %s55 = sshll.u32 [#allocation10], 4
      %s56 = int_to_ptr.vmem [resolvable:$true] %s55
      %61 = dma.hbm_to_vmem [thread:$0]  %s3, 1024, %s56, [#allocation11], 64, 64, 4
    $region17: #{tpu_custom_call.1} parent=1 // pred_fallthru
      _
    // Predicated region
    $region18: #{tpu_custom_call.1} parent=1 // pred_check
      _
    $region19: #{tpu_custom_call.1} parent=1 // pred_check_branch
      %63 = sbr.rel (0) target = $region21
    $region20: #{tpu_custom_call.1} parent=1 // pred_region
      _
    $region21: #{tpu_custom_call.1} parent=1 // pred_fallthru
      _
    // Predicated region
    $region22: #{tpu_custom_call.1} parent=1 // pred_check
      _
    $region23: #{tpu_custom_call.1} parent=1 // pred_check_branch
      %65 = sbr.rel (0) target = $region25
    $region24: #{tpu_custom_call.1} parent=1 // pred_region
      %66 = dma.done [#allocation5], 2048
    $region25: #{tpu_custom_call.1} parent=1 // pred_fallthru
      _
    // Predicated region
    $region26: #{tpu_custom_call.1} parent=1 // pred_check
      _
    $region27: #{tpu_custom_call.1} parent=1 // pred_check_branch
      %68 = sbr.rel (0) target = $region29
    $region28: #{tpu_custom_call.1} parent=1 // pred_region
      %69 = dma.done [#allocation8], 2048
    $region29: #{tpu_custom_call.1} parent=1 // pred_fallthru
      _
    // Predicated region
    $region30: #{tpu_custom_call.1} parent=1 // pred_check
      _
    $region31: #{tpu_custom_call.1} parent=1 // pred_check_branch
      %71 = sbr.rel (0) target = $region33
    $region32: #{tpu_custom_call.1} parent=1 // pred_region
      %72 = dma.done [#allocation8], 2048
    $region33: #{tpu_custom_call.1} parent=1 // pred_fallthru
      _
    // Predicated region
    $region34: #{tpu_custom_call.1} parent=1 // pred_check
      _
    $region35: #{tpu_custom_call.1} parent=1 // pred_check_branch
      %74 = sbr.rel (0) target = $region37
    $region36: #{tpu_custom_call.1} parent=1 // pred_region
      %75 = dma.done [#allocation11], 1024
    $region37: #{tpu_custom_call.1} parent=1 // pred_fallthru
      _
    %p77 = scmp.eq.s32.totalorder 0, 0
    // Predicated region
    $region38: #{tpu_custom_call.1} parent=1 // pred_check
      %p78 = pneg %p77
    $region39: #{tpu_custom_call.1} parent=1 // pred_check_branch
      %80 = sbr.rel (%p78) target = $region41
    $region40: #{tpu_custom_call.1} parent=1 // pred_region
      %81 = vst [vmem:[#allocation2] sm:$0xff] 0.0
      %82 = vst [vmem:[#allocation2 + $0x8] sm:$0xff] 0.0
      %83 = vst [vmem:[#allocation2 + $0x10] sm:$0xff] 0.0
      %84 = vst [vmem:[#allocation2 + $0x18] sm:$0xff] 0.0
      %85 = vst [vmem:[#allocation2 + $0x20] sm:$0xff] 0.0
      %86 = vst [vmem:[#allocation2 + $0x28] sm:$0xff] 0.0
      %87 = vst [vmem:[#allocation2 + $0x30] sm:$0xff] 0.0
      %88 = vst [vmem:[#allocation2 + $0x38] sm:$0xff] 0.0
      %89 = vst [vmem:[#allocation2 + $0x40] sm:$0xff] 0.0
      %90 = vst [vmem:[#allocation2 + $0x48] sm:$0xff] 0.0
      %91 = vst [vmem:[#allocation2 + $0x50] sm:$0xff] 0.0
      %92 = vst [vmem:[#allocation2 + $0x58] sm:$0xff] 0.0
      %93 = vst [vmem:[#allocation2 + $0x60] sm:$0xff] 0.0
      %94 = vst [vmem:[#allocation2 + $0x68] sm:$0xff] 0.0
      %95 = vst [vmem:[#allocation2 + $0x70] sm:$0xff] 0.0
      %96 = vst [vmem:[#allocation2 + $0x78] sm:$0xff] 0.0
      %97 = vst [vmem:[#allocation2 + $0x80] sm:$0xff] 0.0
      %98 = vst [vmem:[#allocation2 + $0x88] sm:$0xff] 0.0
      %99 = vst [vmem:[#allocation2 + $0x90] sm:$0xff] 0.0
      %100 = vst [vmem:[#allocation2 + $0x98] sm:$0xff] 0.0
      %101 = vst [vmem:[#allocation2 + $0xa0] sm:$0xff] 0.0
      %102 = vst [vmem:[#allocation2 + $0xa8] sm:$0xff] 0.0
      %103 = vst [vmem:[#allocation2 + $0xb0] sm:$0xff] 0.0
      %104 = vst [vmem:[#allocation2 + $0xb8] sm:$0xff] 0.0
      %105 = vst [vmem:[#allocation2 + $0xc0] sm:$0xff] 0.0
      %106 = vst [vmem:[#allocation2 + $0xc8] sm:$0xff] 0.0
      %107 = vst [vmem:[#allocation2 + $0xd0] sm:$0xff] 0.0
      %108 = vst [vmem:[#allocation2 + $0xd8] sm:$0xff] 0.0
      %109 = vst [vmem:[#allocation2 + $0xe0] sm:$0xff] 0.0
      %110 = vst [vmem:[#allocation2 + $0xe8] sm:$0xff] 0.0
      %111 = vst [vmem:[#allocation2 + $0xf0] sm:$0xff] 0.0
      %112 = vst [vmem:[#allocation2 + $0xf8] sm:$0xff] 0.0
      %vm113 = vcmask 7168
      %114 = vst.msk [vmem:[#allocation3] sm:$0xff] %vm113, 0.0
      %115 = vst.msk [vmem:[#allocation3 + $0x8] sm:$0xff] %vm113, 0.0
      %116 = vst.msk [vmem:[#allocation3 + $0x10] sm:$0xff] %vm113, 0.0
      %117 = vst.msk [vmem:[#allocation3 + $0x18] sm:$0xff] %vm113, 0.0
      %118 = vst.msk [vmem:[#allocation3 + $0x20] sm:$0xff] %vm113, 0.0
      %119 = vst.msk [vmem:[#allocation3 + $0x28] sm:$0xff] %vm113, 0.0
      %120 = vst.msk [vmem:[#allocation3 + $0x30] sm:$0xff] %vm113, 0.0
      %121 = vst.msk [vmem:[#allocation3 + $0x38] sm:$0xff] %vm113, 0.0
      %122 = vst.msk [vmem:[#allocation3 + $0x40] sm:$0xff] %vm113, 0.0
      %123 = vst.msk [vmem:[#allocation3 + $0x48] sm:$0xff] %vm113, 0.0
      %124 = vst.msk [vmem:[#allocation3 + $0x50] sm:$0xff] %vm113, 0.0
      %125 = vst.msk [vmem:[#allocation3 + $0x58] sm:$0xff] %vm113, 0.0
      %126 = vst.msk [vmem:[#allocation3 + $0x60] sm:$0xff] %vm113, 0.0
      %127 = vst.msk [vmem:[#allocation3 + $0x68] sm:$0xff] %vm113, 0.0
      %128 = vst.msk [vmem:[#allocation3 + $0x70] sm:$0xff] %vm113, 0.0
      %129 = vst.msk [vmem:[#allocation3 + $0x78] sm:$0xff] %vm113, 0.0
      %130 = vst.msk [vmem:[#allocation3 + $0x80] sm:$0xff] %vm113, 0.0
      %131 = vst.msk [vmem:[#allocation3 + $0x88] sm:$0xff] %vm113, 0.0
      %132 = vst.msk [vmem:[#allocation3 + $0x90] sm:$0xff] %vm113, 0.0
      %133 = vst.msk [vmem:[#allocation3 + $0x98] sm:$0xff] %vm113, 0.0
      %134 = vst.msk [vmem:[#allocation3 + $0xa0] sm:$0xff] %vm113, 0.0
      %135 = vst.msk [vmem:[#allocation3 + $0xa8] sm:$0xff] %vm113, 0.0
      %136 = vst.msk [vmem:[#allocation3 + $0xb0] sm:$0xff] %vm113, 0.0
      %137 = vst.msk [vmem:[#allocation3 + $0xb8] sm:$0xff] %vm113, 0.0
      %138 = vst.msk [vmem:[#allocation3 + $0xc0] sm:$0xff] %vm113, 0.0
      %139 = vst.msk [vmem:[#allocation3 + $0xc8] sm:$0xff] %vm113, 0.0
      %140 = vst.msk [vmem:[#allocation3 + $0xd0] sm:$0xff] %vm113, 0.0
      %141 = vst.msk [vmem:[#allocation3 + $0xd8] sm:$0xff] %vm113, 0.0
      %142 = vst.msk [vmem:[#allocation3 + $0xe0] sm:$0xff] %vm113, 0.0
      %143 = vst.msk [vmem:[#allocation3 + $0xe8] sm:$0xff] %vm113, 0.0
      %144 = vst.msk [vmem:[#allocation3 + $0xf0] sm:$0xff] %vm113, 0.0
      %145 = vst.msk [vmem:[#allocation3 + $0xf8] sm:$0xff] %vm113, 0.0
    $region41: #{tpu_custom_call.1} parent=1 // pred_fallthru
      _
    %v146 = vld [vmem:[#allocation4] sm:$0xff]
    %v147 = vld [vmem:[#allocation4 + $0x8] sm:$0xff]
    %v148 = vld [vmem:[#allocation4 + $0x10] sm:$0xff]
    %v149 = vld [vmem:[#allocation4 + $0x18] sm:$0xff]
    %v150 = vld [vmem:[#allocation4 + $0x20] sm:$0xff]
    %v151 = vld [vmem:[#allocation4 + $0x28] sm:$0xff]
    %v152 = vld [vmem:[#allocation4 + $0x30] sm:$0xff]
    %v153 = vld [vmem:[#allocation4 + $0x38] sm:$0xff]
    %v154 = vld [vmem:[#allocation4 + $0x40] sm:$0xff]
    %v155 = vld [vmem:[#allocation4 + $0x48] sm:$0xff]
    %v156 = vld [vmem:[#allocation4 + $0x50] sm:$0xff]
    %v157 = vld [vmem:[#allocation4 + $0x58] sm:$0xff]
    %v158 = vld [vmem:[#allocation4 + $0x60] sm:$0xff]
    %v159 = vld [vmem:[#allocation4 + $0x68] sm:$0xff]
    %v160 = vld [vmem:[#allocation4 + $0x70] sm:$0xff]
    %v161 = vld [vmem:[#allocation4 + $0x78] sm:$0xff]
    %v162 = vld [vmem:[#allocation2] sm:$0xff]
    %v163 = vld [vmem:[#allocation2 + $0x8] sm:$0xff]
    %v164 = vld [vmem:[#allocation2 + $0x10] sm:$0xff]
    %v165 = vld [vmem:[#allocation2 + $0x18] sm:$0xff]
    %v166 = vld [vmem:[#allocation2 + $0x20] sm:$0xff]
    %v167 = vld [vmem:[#allocation2 + $0x28] sm:$0xff]
    %v168 = vld [vmem:[#allocation2 + $0x30] sm:$0xff]
    %v169 = vld [vmem:[#allocation2 + $0x38] sm:$0xff]
    %v170 = vld [vmem:[#allocation2 + $0x40] sm:$0xff]
    %v171 = vld [vmem:[#allocation2 + $0x48] sm:$0xff]
    %v172 = vld [vmem:[#allocation2 + $0x50] sm:$0xff]
    %v173 = vld [vmem:[#allocation2 + $0x58] sm:$0xff]
    %v174 = vld [vmem:[#allocation2 + $0x60] sm:$0xff]
    %v175 = vld [vmem:[#allocation2 + $0x68] sm:$0xff]
    %v176 = vld [vmem:[#allocation2 + $0x70] sm:$0xff]
    %v177 = vld [vmem:[#allocation2 + $0x78] sm:$0xff]
    %v178 = vld [vmem:[#allocation2 + $0x80] sm:$0xff]
    %v179 = vld [vmem:[#allocation2 + $0x88] sm:$0xff]
    %v180 = vld [vmem:[#allocation2 + $0x90] sm:$0xff]
    %v181 = vld [vmem:[#allocation2 + $0x98] sm:$0xff]
    %v182 = vld [vmem:[#allocation2 + $0xa0] sm:$0xff]
    %v183 = vld [vmem:[#allocation2 + $0xa8] sm:$0xff]
    %v184 = vld [vmem:[#allocation2 + $0xb0] sm:$0xff]
    %v185 = vld [vmem:[#allocation2 + $0xb8] sm:$0xff]
    %v186 = vld [vmem:[#allocation2 + $0xc0] sm:$0xff]
    %v187 = vld [vmem:[#allocation2 + $0xc8] sm:$0xff]
    %v188 = vld [vmem:[#allocation2 + $0xd0] sm:$0xff]
    %v189 = vld [vmem:[#allocation2 + $0xd8] sm:$0xff]
    %v190 = vld [vmem:[#allocation2 + $0xe0] sm:$0xff]
    %v191 = vld [vmem:[#allocation2 + $0xe8] sm:$0xff]
    %v192 = vld [vmem:[#allocation2 + $0xf0] sm:$0xff]
    %v193 = vld [vmem:[#allocation2 + $0xf8] sm:$0xff]
    %v194 = vunpack.c.l.s8.bf16 %v146
    %v195 = vunpack.c.l.s8.bf16 %v147
    %v196 = vunpack.c.h.s8.bf16 %v146
    %v197 = vunpack.c.h.s8.bf16 %v147
    %v198 = vunpack.c.l.s8.bf16 %v148
    %v199 = vunpack.c.l.s8.bf16 %v149
    %v200 = vunpack.c.h.s8.bf16 %v148
    %v201 = vunpack.c.h.s8.bf16 %v149
    %v202 = vunpack.c.l.s8.bf16 %v150
    %v203 = vunpack.c.l.s8.bf16 %v151
    %v204 = vunpack.c.h.s8.bf16 %v150
    %v205 = vunpack.c.h.s8.bf16 %v151
    %v206 = vunpack.c.l.s8.bf16 %v152
    %v207 = vunpack.c.l.s8.bf16 %v153
    %v208 = vunpack.c.h.s8.bf16 %v152
    %v209 = vunpack.c.h.s8.bf16 %v153
    %v210 = vunpack.c.l.s8.bf16 %v154
    %v211 = vunpack.c.l.s8.bf16 %v155
    %v212 = vunpack.c.h.s8.bf16 %v154
    %v213 = vunpack.c.h.s8.bf16 %v155
    %v214 = vunpack.c.l.s8.bf16 %v156
    %v215 = vunpack.c.l.s8.bf16 %v157
    %v216 = vunpack.c.h.s8.bf16 %v156
    %v217 = vunpack.c.h.s8.bf16 %v157
    %v218 = vunpack.c.l.s8.bf16 %v158
    %v219 = vunpack.c.l.s8.bf16 %v159
    %v220 = vunpack.c.h.s8.bf16 %v158
    %v221 = vunpack.c.h.s8.bf16 %v159
    %v222 = vunpack.c.l.s8.bf16 %v160
    %v223 = vunpack.c.l.s8.bf16 %v161
    %v224 = vunpack.c.h.s8.bf16 %v160
    %v225 = vunpack.c.h.s8.bf16 %v161
    %v226 = vld [vmem:[#allocation7] sm:$0xf]
    %v227 = vld [vmem:[#allocation7 + $0x4] sm:$0xf]
    %v228 = vld [vmem:[#allocation7 + $0x8] sm:$0xf]
    %v229 = vld [vmem:[#allocation7 + $0xc] sm:$0xf]
    %v230 = vld [vmem:[#allocation7 + $0x10] sm:$0xf]
    %v231 = vld [vmem:[#allocation7 + $0x14] sm:$0xf]
    %v232 = vld [vmem:[#allocation7 + $0x18] sm:$0xf]
    %v233 = vld [vmem:[#allocation7 + $0x1c] sm:$0xf]
    %v234 = vld [vmem:[#allocation7 + $0x20] sm:$0xf]
    %v235 = vld [vmem:[#allocation7 + $0x24] sm:$0xf]
    %v236 = vld [vmem:[#allocation7 + $0x28] sm:$0xf]
    %v237 = vld [vmem:[#allocation7 + $0x2c] sm:$0xf]
    %v238 = vld [vmem:[#allocation7 + $0x30] sm:$0xf]
    %v239 = vld [vmem:[#allocation7 + $0x34] sm:$0xf]
    %v240 = vld [vmem:[#allocation7 + $0x38] sm:$0xf]
    %v241 = vld [vmem:[#allocation7 + $0x3c] sm:$0xf]
    %v242 = vld [vmem:[#allocation7 + $0x40] sm:$0xf]
    %v243 = vld [vmem:[#allocation7 + $0x44] sm:$0xf]
    %v244 = vld [vmem:[#allocation7 + $0x48] sm:$0xf]
    %v245 = vld [vmem:[#allocation7 + $0x4c] sm:$0xf]
    %v246 = vld [vmem:[#allocation7 + $0x50] sm:$0xf]
    %v247 = vld [vmem:[#allocation7 + $0x54] sm:$0xf]
    %v248 = vld [vmem:[#allocation7 + $0x58] sm:$0xf]
    %v249 = vld [vmem:[#allocation7 + $0x5c] sm:$0xf]
    %v250 = vld [vmem:[#allocation7 + $0x60] sm:$0xf]
    %v251 = vld [vmem:[#allocation7 + $0x64] sm:$0xf]
    %v252 = vld [vmem:[#allocation7 + $0x68] sm:$0xf]
    %v253 = vld [vmem:[#allocation7 + $0x6c] sm:$0xf]
    %v254 = vld [vmem:[#allocation7 + $0x70] sm:$0xf]
    %v255 = vld [vmem:[#allocation7 + $0x74] sm:$0xf]
    %v256 = vld [vmem:[#allocation7 + $0x78] sm:$0xf]
    %v257 = vld [vmem:[#allocation7 + $0x7c] sm:$0xf]
    %v290 = vunpack.c.l.b16 %v226
    %v291 = vunpack.c.l.b16 %v227
    %v292 = vunpack.c.l.b16 %v228
    %v293 = vunpack.c.l.b16 %v229
    %v294 = vunpack.c.l.b16 %v230
    %v295 = vunpack.c.l.b16 %v231
    %v296 = vunpack.c.l.b16 %v232
    %v297 = vunpack.c.l.b16 %v233
    %v298 = vunpack.c.l.b16 %v234
    %v299 = vunpack.c.l.b16 %v235
    %v300 = vunpack.c.l.b16 %v236
    %v301 = vunpack.c.l.b16 %v237
    %v302 = vunpack.c.l.b16 %v238
    %v303 = vunpack.c.l.b16 %v239
    %v304 = vunpack.c.l.b16 %v240
    %v305 = vunpack.c.l.b16 %v241
    %v306 = vunpack.c.l.b16 %v242
    %v307 = vunpack.c.l.b16 %v243
    %v308 = vunpack.c.l.b16 %v244
    %v309 = vunpack.c.l.b16 %v245
    %v310 = vunpack.c.l.b16 %v246
    %v311 = vunpack.c.l.b16 %v247
    %v312 = vunpack.c.l.b16 %v248
    %v313 = vunpack.c.l.b16 %v249
    %v314 = vunpack.c.l.b16 %v250
    %v315 = vunpack.c.l.b16 %v251
    %v316 = vunpack.c.l.b16 %v252
    %v317 = vunpack.c.l.b16 %v253
    %v318 = vunpack.c.l.b16 %v254
    %v319 = vunpack.c.l.b16 %v255
    %v320 = vunpack.c.l.b16 %v256
    %v321 = vunpack.c.l.b16 %v257
    %v322 = vpack.c.b16 %v291, %v290
    %v323 = vpack.c.b16 %v293, %v292
    %v324 = vpack.c.b16 %v295, %v294
    %v325 = vpack.c.b16 %v297, %v296
    %v326 = vpack.c.b16 %v299, %v298
    %v327 = vpack.c.b16 %v301, %v300
    %v328 = vpack.c.b16 %v303, %v302
    %v329 = vpack.c.b16 %v305, %v304
    %v330 = vpack.c.b16 %v307, %v306
    %v331 = vpack.c.b16 %v309, %v308
    %v332 = vpack.c.b16 %v311, %v310
    %v333 = vpack.c.b16 %v313, %v312
    %v334 = vpack.c.b16 %v315, %v314
    %v335 = vpack.c.b16 %v317, %v316
    %v336 = vpack.c.b16 %v319, %v318
    %v337 = vpack.c.b16 %v321, %v320
    %354 = vmatprep.subr.bf16.mxu0 0
    %355 = vmatpush1.bf16.msra.mxu0 %v322
    %356 = vmatprep.subr.bf16.mxu0 0
    %357 = vmatpush1.bf16.msra.mxu0 %v323
    %358 = vmatprep.subr.bf16.mxu0 0
    %359 = vmatpush1.bf16.msra.mxu0 %v324
    %360 = vmatprep.subr.bf16.mxu0 0
    %361 = vmatpush1.bf16.msra.mxu0 %v325
    %362 = vmatprep.subr.bf16.mxu0 0
    %363 = vmatpush1.bf16.msra.mxu0 %v326
    %364 = vmatprep.subr.bf16.mxu0 0
    %365 = vmatpush1.bf16.msra.mxu0 %v327
    %366 = vmatprep.subr.bf16.mxu0 0
    %367 = vmatpush1.bf16.msra.mxu0 %v328
    %368 = vmatprep.subr.bf16.mxu0 0
    %369 = vmatpush1.bf16.msra.mxu0 %v329
    %370 = vmatprep.subr.bf16.mxu0 0
    %371 = vmatpush1.bf16.msra.mxu0 %v330
    %372 = vmatprep.subr.bf16.mxu0 0
    %373 = vmatpush1.bf16.msra.mxu0 %v331
    %374 = vmatprep.subr.bf16.mxu0 0
    %375 = vmatpush1.bf16.msra.mxu0 %v332
    %376 = vmatprep.subr.bf16.mxu0 0
    %377 = vmatpush1.bf16.msra.mxu0 %v333
    %378 = vmatprep.subr.bf16.mxu0 0
    %379 = vmatpush1.bf16.msra.mxu0 %v334
    %380 = vmatprep.subr.bf16.mxu0 0
    %381 = vmatpush1.bf16.msra.mxu0 %v335
    %382 = vmatprep.subr.bf16.mxu0 0
    %383 = vmatpush1.bf16.msra.mxu0 %v336
    %384 = vmatprep.subr.bf16.mxu0 0
    %385 = vmatpush1.bf16.msra.mxu0 %v337
    %386 = vmatprep.mubr.bf16.mxu0 %v195
    %387 = vmatmul.mubr.bf16.gmra.mrb[0].mxu0 %v194
    %v388 = vpop.f32.mrb[0].mxu0
    %v389 = vadd.f32 0.0, %v388
    %v390 = vpop.f32.mrb[0].mxu0
    %v391 = vpop.f32.mrb[0].mxu0
    %v392 = vadd.f32 0.0, %v391
    %v393 = vpop.f32.mrb[0].mxu0
    %394 = vmatprep.mubr.bf16.mxu0 %v197
    %395 = vmatmul.mubr.bf16.gmra.mrb[0].mxu0 %v196
    %v396 = vpop.f32.mrb[0].mxu0
    %v397 = vadd.f32 0.0, %v396
    %v398 = vpop.f32.mrb[0].mxu0
    %v399 = vpop.f32.mrb[0].mxu0
    %v400 = vadd.f32 0.0, %v399
    %v401 = vpop.f32.mrb[0].mxu0
    %402 = vmatprep.mubr.bf16.mxu0 %v199
    %403 = vmatmul.mubr.bf16.gmra.mrb[0].mxu0 %v198
    %v404 = vpop.f32.mrb[0].mxu0
    %v405 = vadd.f32 0.0, %v404
    %v406 = vpop.f32.mrb[0].mxu0
    %v407 = vpop.f32.mrb[0].mxu0
    %v408 = vadd.f32 0.0, %v407
    %v409 = vpop.f32.mrb[0].mxu0
    %410 = vmatprep.mubr.bf16.mxu0 %v201
    %411 = vmatmul.mubr.bf16.gmra.mrb[0].mxu0 %v200
    %v412 = vpop.f32.mrb[0].mxu0
    %v413 = vadd.f32 0.0, %v412
    %v414 = vpop.f32.mrb[0].mxu0
    %v415 = vpop.f32.mrb[0].mxu0
    %v416 = vadd.f32 0.0, %v415
    %v417 = vpop.f32.mrb[0].mxu0
    %418 = vmatprep.mubr.bf16.mxu0 %v203
    %419 = vmatmul.mubr.bf16.gmra.mrb[0].mxu0 %v202
    %v420 = vpop.f32.mrb[0].mxu0
    %v421 = vadd.f32 0.0, %v420
    %v422 = vpop.f32.mrb[0].mxu0
    %v423 = vpop.f32.mrb[0].mxu0
    %v424 = vadd.f32 0.0, %v423
    %v425 = vpop.f32.mrb[0].mxu0
    %426 = vmatprep.mubr.bf16.mxu0 %v205
    %427 = vmatmul.mubr.bf16.gmra.mrb[0].mxu0 %v204
    %v428 = vpop.f32.mrb[0].mxu0
    %v429 = vadd.f32 0.0, %v428
    %v430 = vpop.f32.mrb[0].mxu0
    %v431 = vpop.f32.mrb[0].mxu0
    %v432 = vadd.f32 0.0, %v431
    %v433 = vpop.f32.mrb[0].mxu0
    %434 = vmatprep.mubr.bf16.mxu0 %v207
    %435 = vmatmul.mubr.bf16.gmra.mrb[0].mxu0 %v206
    %v436 = vpop.f32.mrb[0].mxu0
    %v437 = vadd.f32 0.0, %v436
    %v438 = vpop.f32.mrb[0].mxu0
    %v439 = vpop.f32.mrb[0].mxu0
    %v440 = vadd.f32 0.0, %v439
    %v441 = vpop.f32.mrb[0].mxu0
    %442 = vmatprep.mubr.bf16.mxu0 %v209
    %443 = vmatmul.mubr.bf16.gmra.mrb[0].mxu0 %v208
    %v444 = vpop.f32.mrb[0].mxu0
    %v445 = vadd.f32 0.0, %v444
    %v446 = vpop.f32.mrb[0].mxu0
    %v447 = vpop.f32.mrb[0].mxu0
    %v448 = vadd.f32 0.0, %v447
    %v449 = vpop.f32.mrb[0].mxu0
    %450 = vmatprep.mubr.bf16.mxu0 %v211
    %451 = vmatmul.mubr.bf16.gmra.mrb[0].mxu0 %v210
    %v452 = vpop.f32.mrb[0].mxu0
    %v453 = vadd.f32 0.0, %v452
    %v454 = vpop.f32.mrb[0].mxu0
    %v455 = vpop.f32.mrb[0].mxu0
    %v456 = vadd.f32 0.0, %v455
    %v457 = vpop.f32.mrb[0].mxu0
    %458 = vmatprep.mubr.bf16.mxu0 %v213
    %459 = vmatmul.mubr.bf16.gmra.mrb[0].mxu0 %v212
    %v460 = vpop.f32.mrb[0].mxu0
    %v461 = vadd.f32 0.0, %v460
    %v462 = vpop.f32.mrb[0].mxu0
    %v463 = vpop.f32.mrb[0].mxu0
    %v464 = vadd.f32 0.0, %v463
    %v465 = vpop.f32.mrb[0].mxu0
    %466 = vmatprep.mubr.bf16.mxu0 %v215
    %467 = vmatmul.mubr.bf16.gmra.mrb[0].mxu0 %v214
    %v468 = vpop.f32.mrb[0].mxu0
    %v469 = vadd.f32 0.0, %v468
    %v470 = vpop.f32.mrb[0].mxu0
    %v471 = vpop.f32.mrb[0].mxu0
    %v472 = vadd.f32 0.0, %v471
    %v473 = vpop.f32.mrb[0].mxu0
    %474 = vmatprep.mubr.bf16.mxu0 %v217
    %475 = vmatmul.mubr.bf16.gmra.mrb[0].mxu0 %v216
    %v476 = vpop.f32.mrb[0].mxu0
    %v477 = vadd.f32 0.0, %v476
    %v478 = vpop.f32.mrb[0].mxu0
    %v479 = vpop.f32.mrb[0].mxu0
    %v480 = vadd.f32 0.0, %v479
    %v481 = vpop.f32.mrb[0].mxu0
    %482 = vmatprep.mubr.bf16.mxu0 %v219
    %483 = vmatmul.mubr.bf16.gmra.mrb[0].mxu0 %v218
    %v484 = vpop.f32.mrb[0].mxu0
    %v485 = vadd.f32 0.0, %v484
    %v486 = vpop.f32.mrb[0].mxu0
    %v487 = vpop.f32.mrb[0].mxu0
    %v488 = vadd.f32 0.0, %v487
    %v489 = vpop.f32.mrb[0].mxu0
    %490 = vmatprep.mubr.bf16.mxu0 %v221
    %491 = vmatmul.mubr.bf16.gmra.mrb[0].mxu0 %v220
    %v492 = vpop.f32.mrb[0].mxu0
    %v493 = vadd.f32 0.0, %v492
    %v494 = vpop.f32.mrb[0].mxu0
    %v495 = vpop.f32.mrb[0].mxu0
    %v496 = vadd.f32 0.0, %v495
    %v497 = vpop.f32.mrb[0].mxu0
    %498 = vmatprep.mubr.bf16.mxu0 %v223
    %499 = vmatmul.mubr.bf16.gmra.mrb[0].mxu0 %v222
    %v500 = vpop.f32.mrb[0].mxu0
    %v501 = vadd.f32 0.0, %v500
    %v502 = vpop.f32.mrb[0].mxu0
    %v503 = vpop.f32.mrb[0].mxu0
    %v504 = vadd.f32 0.0, %v503
    %v505 = vpop.f32.mrb[0].mxu0
    %506 = vmatprep.mubr.bf16.mxu0 %v225
    %507 = vmatmul.mubr.bf16.gmra.mrb[0].mxu0 %v224
    %v508 = vpop.f32.mrb[0].mxu0
    %v509 = vadd.f32 0.0, %v508
    %v510 = vpop.f32.mrb[0].mxu0
    %v511 = vpop.f32.mrb[0].mxu0
    %v512 = vadd.f32 0.0, %v511
    %v513 = vpop.f32.mrb[0].mxu0
    %514 = vdwg.mxu0
    %v515 = vadd.f32 %v162, %v389
    %v516 = vadd.f32 %v163, %v392
    %v517 = vadd.f32 %v164, %v397
    %v518 = vadd.f32 %v165, %v400
    %v519 = vadd.f32 %v166, %v405
    %v520 = vadd.f32 %v167, %v408
    %v521 = vadd.f32 %v168, %v413
    %v522 = vadd.f32 %v169, %v416
    %v523 = vadd.f32 %v170, %v421
    %v524 = vadd.f32 %v171, %v424
    %v525 = vadd.f32 %v172, %v429
    %v526 = vadd.f32 %v173, %v432
    %v527 = vadd.f32 %v174, %v437
    %v528 = vadd.f32 %v175, %v440
    %v529 = vadd.f32 %v176, %v445
    %v530 = vadd.f32 %v177, %v448
    %v531 = vadd.f32 %v178, %v453
    %v532 = vadd.f32 %v179, %v456
    %v533 = vadd.f32 %v180, %v461
    %v534 = vadd.f32 %v181, %v464
    %v535 = vadd.f32 %v182, %v469
    %v536 = vadd.f32 %v183, %v472
    %v537 = vadd.f32 %v184, %v477
    %v538 = vadd.f32 %v185, %v480
    %v539 = vadd.f32 %v186, %v485
    %v540 = vadd.f32 %v187, %v488
    %v541 = vadd.f32 %v188, %v493
    %v542 = vadd.f32 %v189, %v496
    %v543 = vadd.f32 %v190, %v501
    %v544 = vadd.f32 %v191, %v504
    %v545 = vadd.f32 %v192, %v509
    %v546 = vadd.f32 %v193, %v512
    %547 = vst [vmem:[#allocation2] sm:$0xff] %v515
    %548 = vst [vmem:[#allocation2 + $0x8] sm:$0xff] %v516
    %549 = vst [vmem:[#allocation2 + $0x10] sm:$0xff] %v517
    %550 = vst [vmem:[#allocation2 + $0x18] sm:$0xff] %v518
    %551 = vst [vmem:[#allocation2 + $0x20] sm:$0xff] %v519
    %552 = vst [vmem:[#allocation2 + $0x28] sm:$0xff] %v520
    %553 = vst [vmem:[#allocation2 + $0x30] sm:$0xff] %v521
    %554 = vst [vmem:[#allocation2 + $0x38] sm:$0xff] %v522
    %555 = vst [vmem:[#allocation2 + $0x40] sm:$0xff] %v523
    %556 = vst [vmem:[#allocation2 + $0x48] sm:$0xff] %v524
    %557 = vst [vmem:[#allocation2 + $0x50] sm:$0xff] %v525
    %558 = vst [vmem:[#allocation2 + $0x58] sm:$0xff] %v526
    %559 = vst [vmem:[#allocation2 + $0x60] sm:$0xff] %v527
    %560 = vst [vmem:[#allocation2 + $0x68] sm:$0xff] %v528
    %561 = vst [vmem:[#allocation2 + $0x70] sm:$0xff] %v529
    %562 = vst [vmem:[#allocation2 + $0x78] sm:$0xff] %v530
    %563 = vst [vmem:[#allocation2 + $0x80] sm:$0xff] %v531
    %564 = vst [vmem:[#allocation2 + $0x88] sm:$0xff] %v532
    %565 = vst [vmem:[#allocation2 + $0x90] sm:$0xff] %v533
    %566 = vst [vmem:[#allocation2 + $0x98] sm:$0xff] %v534
    %567 = vst [vmem:[#allocation2 + $0xa0] sm:$0xff] %v535
    %568 = vst [vmem:[#allocation2 + $0xa8] sm:$0xff] %v536
    %569 = vst [vmem:[#allocation2 + $0xb0] sm:$0xff] %v537
    %570 = vst [vmem:[#allocation2 + $0xb8] sm:$0xff] %v538
    %571 = vst [vmem:[#allocation2 + $0xc0] sm:$0xff] %v539
    %572 = vst [vmem:[#allocation2 + $0xc8] sm:$0xff] %v540
    %573 = vst [vmem:[#allocation2 + $0xd0] sm:$0xff] %v541
    %574 = vst [vmem:[#allocation2 + $0xd8] sm:$0xff] %v542
    %575 = vst [vmem:[#allocation2 + $0xe0] sm:$0xff] %v543
    %576 = vst [vmem:[#allocation2 + $0xe8] sm:$0xff] %v544
    %577 = vst [vmem:[#allocation2 + $0xf0] sm:$0xff] %v545
    %578 = vst [vmem:[#allocation2 + $0xf8] sm:$0xff] %v546
    %v579 = vld [vmem:[#allocation3] sm:$0xff]
    %v580 = vld [vmem:[#allocation3 + $0x8] sm:$0xff]
    %v581 = vld [vmem:[#allocation3 + $0x10] sm:$0xff]
    %v582 = vld [vmem:[#allocation3 + $0x18] sm:$0xff]
    %v583 = vld [vmem:[#allocation3 + $0x20] sm:$0xff]
    %v584 = vld [vmem:[#allocation3 + $0x28] sm:$0xff]
    %v585 = vld [vmem:[#allocation3 + $0x30] sm:$0xff]
    %v586 = vld [vmem:[#allocation3 + $0x38] sm:$0xff]
    %v587 = vld [vmem:[#allocation3 + $0x40] sm:$0xff]
    %v588 = vld [vmem:[#allocation3 + $0x48] sm:$0xff]
    %v589 = vld [vmem:[#allocation3 + $0x50] sm:$0xff]
    %v590 = vld [vmem:[#allocation3 + $0x58] sm:$0xff]
    %v591 = vld [vmem:[#allocation3 + $0x60] sm:$0xff]
    %v592 = vld [vmem:[#allocation3 + $0x68] sm:$0xff]
    %v593 = vld [vmem:[#allocation3 + $0x70] sm:$0xff]
    %v594 = vld [vmem:[#allocation3 + $0x78] sm:$0xff]
    %v595 = vld [vmem:[#allocation3 + $0x80] sm:$0xff]
    %v596 = vld [vmem:[#allocation3 + $0x88] sm:$0xff]
    %v597 = vld [vmem:[#allocation3 + $0x90] sm:$0xff]
    %v598 = vld [vmem:[#allocation3 + $0x98] sm:$0xff]
    %v599 = vld [vmem:[#allocation3 + $0xa0] sm:$0xff]
    %v600 = vld [vmem:[#allocation3 + $0xa8] sm:$0xff]
    %v601 = vld [vmem:[#allocation3 + $0xb0] sm:$0xff]
    %v602 = vld [vmem:[#allocation3 + $0xb8] sm:$0xff]
    %v603 = vld [vmem:[#allocation3 + $0xc0] sm:$0xff]
    %v604 = vld [vmem:[#allocation3 + $0xc8] sm:$0xff]
    %v605 = vld [vmem:[#allocation3 + $0xd0] sm:$0xff]
    %v606 = vld [vmem:[#allocation3 + $0xd8] sm:$0xff]
    %v607 = vld [vmem:[#allocation3 + $0xe0] sm:$0xff]
    %v608 = vld [vmem:[#allocation3 + $0xe8] sm:$0xff]
    %v609 = vld [vmem:[#allocation3 + $0xf0] sm:$0xff]
    %v610 = vld [vmem:[#allocation3 + $0xf8] sm:$0xff]
    %v611 = vunpack.c.0.s8 %v146
    %v612 = vunpack.c.0.s8 %v147
    %v613 = vunpack.c.1.s8 %v146
    %v614 = vunpack.c.1.s8 %v147
    %v615 = vunpack.c.2.s8 %v146
    %v616 = vunpack.c.2.s8 %v147
    %v617 = vunpack.c.3.s8 %v146
    %v618 = vunpack.c.3.s8 %v147
    %v619 = vunpack.c.0.s8 %v148
    %v620 = vunpack.c.0.s8 %v149
    %v621 = vunpack.c.1.s8 %v148
    %v622 = vunpack.c.1.s8 %v149
    %v623 = vunpack.c.2.s8 %v148
    %v624 = vunpack.c.2.s8 %v149
    %v625 = vunpack.c.3.s8 %v148
    %v626 = vunpack.c.3.s8 %v149
    %v627 = vunpack.c.0.s8 %v150
    %v628 = vunpack.c.0.s8 %v151
    %v629 = vunpack.c.1.s8 %v150
    %v630 = vunpack.c.1.s8 %v151
    %v631 = vunpack.c.2.s8 %v150
    %v632 = vunpack.c.2.s8 %v151
    %v633 = vunpack.c.3.s8 %v150
    %v634 = vunpack.c.3.s8 %v151
    %v635 = vunpack.c.0.s8 %v152
    %v636 = vunpack.c.0.s8 %v153
    %v637 = vunpack.c.1.s8 %v152
    %v638 = vunpack.c.1.s8 %v153
    %v639 = vunpack.c.2.s8 %v152
    %v640 = vunpack.c.2.s8 %v153
    %v641 = vunpack.c.3.s8 %v152
    %v642 = vunpack.c.3.s8 %v153
    %v643 = vunpack.c.0.s8 %v154
    %v644 = vunpack.c.0.s8 %v155
    %v645 = vunpack.c.1.s8 %v154
    %v646 = vunpack.c.1.s8 %v155
    %v647 = vunpack.c.2.s8 %v154
    %v648 = vunpack.c.2.s8 %v155
    %v649 = vunpack.c.3.s8 %v154
    %v650 = vunpack.c.3.s8 %v155
    %v651 = vunpack.c.0.s8 %v156
    %v652 = vunpack.c.0.s8 %v157
    %v653 = vunpack.c.1.s8 %v156
    %v654 = vunpack.c.1.s8 %v157
    %v655 = vunpack.c.2.s8 %v156
    %v656 = vunpack.c.2.s8 %v157
    %v657 = vunpack.c.3.s8 %v156
    %v658 = vunpack.c.3.s8 %v157
    %v659 = vunpack.c.0.s8 %v158
    %v660 = vunpack.c.0.s8 %v159
    %v661 = vunpack.c.1.s8 %v158
    %v662 = vunpack.c.1.s8 %v159
    %v663 = vunpack.c.2.s8 %v158
    %v664 = vunpack.c.2.s8 %v159
    %v665 = vunpack.c.3.s8 %v158
    %v666 = vunpack.c.3.s8 %v159
    %v667 = vunpack.c.0.s8 %v160
    %v668 = vunpack.c.0.s8 %v161
    %v669 = vunpack.c.1.s8 %v160
    %v670 = vunpack.c.1.s8 %v161
    %v671 = vunpack.c.2.s8 %v160
    %v672 = vunpack.c.2.s8 %v161
    %v673 = vunpack.c.3.s8 %v160
    %v674 = vunpack.c.3.s8 %v161
    %v675 = vcvt.s32.f32 %v611
    %v676 = vcvt.s32.f32 %v612
    %v677 = vcvt.s32.f32 %v613
    %v678 = vcvt.s32.f32 %v614
    %v679 = vcvt.s32.f32 %v615
    %v680 = vcvt.s32.f32 %v616
    %v681 = vcvt.s32.f32 %v617
    %v682 = vcvt.s32.f32 %v618
    %v683 = vcvt.s32.f32 %v619
    %v684 = vcvt.s32.f32 %v620
    %v685 = vcvt.s32.f32 %v621
    %v686 = vcvt.s32.f32 %v622
    %v687 = vcvt.s32.f32 %v623
    %v688 = vcvt.s32.f32 %v624
    %v689 = vcvt.s32.f32 %v625
    %v690 = vcvt.s32.f32 %v626
    %v691 = vcvt.s32.f32 %v627
    %v692 = vcvt.s32.f32 %v628
    %v693 = vcvt.s32.f32 %v629
    %v694 = vcvt.s32.f32 %v630
    %v695 = vcvt.s32.f32 %v631
    %v696 = vcvt.s32.f32 %v632
    %v697 = vcvt.s32.f32 %v633
    %v698 = vcvt.s32.f32 %v634
    %v699 = vcvt.s32.f32 %v635
    %v700 = vcvt.s32.f32 %v636
    %v701 = vcvt.s32.f32 %v637
    %v702 = vcvt.s32.f32 %v638
    %v703 = vcvt.s32.f32 %v639
    %v704 = vcvt.s32.f32 %v640
    %v705 = vcvt.s32.f32 %v641
    %v706 = vcvt.s32.f32 %v642
    %v707 = vcvt.s32.f32 %v643
    %v708 = vcvt.s32.f32 %v644
    %v709 = vcvt.s32.f32 %v645
    %v710 = vcvt.s32.f32 %v646
    %v711 = vcvt.s32.f32 %v647
    %v712 = vcvt.s32.f32 %v648
    %v713 = vcvt.s32.f32 %v649
    %v714 = vcvt.s32.f32 %v650
    %v715 = vcvt.s32.f32 %v651
    %v716 = vcvt.s32.f32 %v652
    %v717 = vcvt.s32.f32 %v653
    %v718 = vcvt.s32.f32 %v654
    %v719 = vcvt.s32.f32 %v655
    %v720 = vcvt.s32.f32 %v656
    %v721 = vcvt.s32.f32 %v657
    %v722 = vcvt.s32.f32 %v658
    %v723 = vcvt.s32.f32 %v659
    %v724 = vcvt.s32.f32 %v660
    %v725 = vcvt.s32.f32 %v661
    %v726 = vcvt.s32.f32 %v662
    %v727 = vcvt.s32.f32 %v663
    %v728 = vcvt.s32.f32 %v664
    %v729 = vcvt.s32.f32 %v665
    %v730 = vcvt.s32.f32 %v666
    %v731 = vcvt.s32.f32 %v667
    %v732 = vcvt.s32.f32 %v668
    %v733 = vcvt.s32.f32 %v669
    %v734 = vcvt.s32.f32 %v670
    %v735 = vcvt.s32.f32 %v671
    %v736 = vcvt.s32.f32 %v672
    %v737 = vcvt.s32.f32 %v673
    %v738 = vcvt.s32.f32 %v674
    %v739 = vadd.f32 %v675, %v676
    %740 = vadd.xlane.f32.xlu0 %v739
    %v741 = vpop.xlane.xlu0 %740
    %v742 = vadd.f32 %v677, %v678
    %743 = vadd.xlane.f32.xlu0 %v742
    %v744 = vpop.xlane.xlu0 %743
    %v745 = vadd.f32 %v679, %v680
    %746 = vadd.xlane.f32.xlu0 %v745
    %v747 = vpop.xlane.xlu0 %746
    %v748 = vadd.f32 %v681, %v682
    %749 = vadd.xlane.f32.xlu0 %v748
    %v750 = vpop.xlane.xlu0 %749
    %v751 = vadd.f32 %v683, %v684
    %752 = vadd.xlane.f32.xlu0 %v751
    %v753 = vpop.xlane.xlu0 %752
    %v754 = vadd.f32 %v685, %v686
    %755 = vadd.xlane.f32.xlu0 %v754
    %v756 = vpop.xlane.xlu0 %755
    %v757 = vadd.f32 %v687, %v688
    %758 = vadd.xlane.f32.xlu0 %v757
    %v759 = vpop.xlane.xlu0 %758
    %v760 = vadd.f32 %v689, %v690
    %761 = vadd.xlane.f32.xlu0 %v760
    %v762 = vpop.xlane.xlu0 %761
    %v763 = vadd.f32 %v691, %v692
    %764 = vadd.xlane.f32.xlu0 %v763
    %v765 = vpop.xlane.xlu0 %764
    %v766 = vadd.f32 %v693, %v694
    %767 = vadd.xlane.f32.xlu0 %v766
    %v768 = vpop.xlane.xlu0 %767
    %v769 = vadd.f32 %v695, %v696
    %770 = vadd.xlane.f32.xlu0 %v769
    %v771 = vpop.xlane.xlu0 %770
    %v772 = vadd.f32 %v697, %v698
    %773 = vadd.xlane.f32.xlu0 %v772
    %v774 = vpop.xlane.xlu0 %773
    %v775 = vadd.f32 %v699, %v700
    %776 = vadd.xlane.f32.xlu0 %v775
    %v777 = vpop.xlane.xlu0 %776
    %v778 = vadd.f32 %v701, %v702
    %779 = vadd.xlane.f32.xlu0 %v778
    %v780 = vpop.xlane.xlu0 %779
    %v781 = vadd.f32 %v703, %v704
    %782 = vadd.xlane.f32.xlu0 %v781
    %v783 = vpop.xlane.xlu0 %782
    %v784 = vadd.f32 %v705, %v706
    %785 = vadd.xlane.f32.xlu0 %v784
    %v786 = vpop.xlane.xlu0 %785
    %v787 = vadd.f32 %v707, %v708
    %788 = vadd.xlane.f32.xlu0 %v787
    %v789 = vpop.xlane.xlu0 %788
    %v790 = vadd.f32 %v709, %v710
    %791 = vadd.xlane.f32.xlu0 %v790
    %v792 = vpop.xlane.xlu0 %791
    %v793 = vadd.f32 %v711, %v712
    %794 = vadd.xlane.f32.xlu0 %v793
    %v795 = vpop.xlane.xlu0 %794
    %v796 = vadd.f32 %v713, %v714
    %797 = vadd.xlane.f32.xlu0 %v796
    %v798 = vpop.xlane.xlu0 %797
    %v799 = vadd.f32 %v715, %v716
    %800 = vadd.xlane.f32.xlu0 %v799
    %v801 = vpop.xlane.xlu0 %800
    %v802 = vadd.f32 %v717, %v718
    %803 = vadd.xlane.f32.xlu0 %v802
    %v804 = vpop.xlane.xlu0 %803
    %v805 = vadd.f32 %v719, %v720
    %806 = vadd.xlane.f32.xlu0 %v805
    %v807 = vpop.xlane.xlu0 %806
    %v808 = vadd.f32 %v721, %v722
    %809 = vadd.xlane.f32.xlu0 %v808
    %v810 = vpop.xlane.xlu0 %809
    %v811 = vadd.f32 %v723, %v724
    %812 = vadd.xlane.f32.xlu0 %v811
    %v813 = vpop.xlane.xlu0 %812
    %v814 = vadd.f32 %v725, %v726
    %815 = vadd.xlane.f32.xlu0 %v814
    %v816 = vpop.xlane.xlu0 %815
    %v817 = vadd.f32 %v727, %v728
    %818 = vadd.xlane.f32.xlu0 %v817
    %v819 = vpop.xlane.xlu0 %818
    %v820 = vadd.f32 %v729, %v730
    %821 = vadd.xlane.f32.xlu0 %v820
    %v822 = vpop.xlane.xlu0 %821
    %v823 = vadd.f32 %v731, %v732
    %824 = vadd.xlane.f32.xlu0 %v823
    %v825 = vpop.xlane.xlu0 %824
    %v826 = vadd.f32 %v733, %v734
    %827 = vadd.xlane.f32.xlu0 %v826
    %v828 = vpop.xlane.xlu0 %827
    %v829 = vadd.f32 %v735, %v736
    %830 = vadd.xlane.f32.xlu0 %v829
    %v831 = vpop.xlane.xlu0 %830
    %v832 = vadd.f32 %v737, %v738
    %833 = vadd.xlane.f32.xlu0 %v832
    %v834 = vpop.xlane.xlu0 %833
    %v835 = vadd.f32 %v579, %v741
    %v836 = vadd.f32 %v580, %v744
    %v837 = vadd.f32 %v581, %v747
    %v838 = vadd.f32 %v582, %v750
    %v839 = vadd.f32 %v583, %v753
    %v840 = vadd.f32 %v584, %v756
    %v841 = vadd.f32 %v585, %v759
    %v842 = vadd.f32 %v586, %v762
    %v843 = vadd.f32 %v587, %v765
    %v844 = vadd.f32 %v588, %v768
    %v845 = vadd.f32 %v589, %v771
    %v846 = vadd.f32 %v590, %v774
    %v847 = vadd.f32 %v591, %v777
    %v848 = vadd.f32 %v592, %v780
    %v849 = vadd.f32 %v593, %v783
    %v850 = vadd.f32 %v594, %v786
    %v851 = vadd.f32 %v595, %v789
    %v852 = vadd.f32 %v596, %v792
    %v853 = vadd.f32 %v597, %v795
    %v854 = vadd.f32 %v598, %v798
    %v855 = vadd.f32 %v599, %v801
    %v856 = vadd.f32 %v600, %v804
    %v857 = vadd.f32 %v601, %v807
    %v858 = vadd.f32 %v602, %v810
    %v859 = vadd.f32 %v603, %v813
    %v860 = vadd.f32 %v604, %v816
    %v861 = vadd.f32 %v605, %v819
    %v862 = vadd.f32 %v606, %v822
    %v863 = vadd.f32 %v607, %v825
    %v864 = vadd.f32 %v608, %v828
    %v865 = vadd.f32 %v609, %v831
    %v866 = vadd.f32 %v610, %v834
    %vm867 = vcmask 7168
    %868 = vst.msk [vmem:[#allocation3] sm:$0xff] %vm867, %v835
    %869 = vst.msk [vmem:[#allocation3 + $0x8] sm:$0xff] %vm867, %v836
    %870 = vst.msk [vmem:[#allocation3 + $0x10] sm:$0xff] %vm867, %v837
    %871 = vst.msk [vmem:[#allocation3 + $0x18] sm:$0xff] %vm867, %v838
    %872 = vst.msk [vmem:[#allocation3 + $0x20] sm:$0xff] %vm867, %v839
    %873 = vst.msk [vmem:[#allocation3 + $0x28] sm:$0xff] %vm867, %v840
    %874 = vst.msk [vmem:[#allocation3 + $0x30] sm:$0xff] %vm867, %v841
    %875 = vst.msk [vmem:[#allocation3 + $0x38] sm:$0xff] %vm867, %v842
    %876 = vst.msk [vmem:[#allocation3 + $0x40] sm:$0xff] %vm867, %v843
    %877 = vst.msk [vmem:[#allocation3 + $0x48] sm:$0xff] %vm867, %v844
    %878 = vst.msk [vmem:[#allocation3 + $0x50] sm:$0xff] %vm867, %v845
    %879 = vst.msk [vmem:[#allocation3 + $0x58] sm:$0xff] %vm867, %v846
    %880 = vst.msk [vmem:[#allocation3 + $0x60] sm:$0xff] %vm867, %v847
    %881 = vst.msk [vmem:[#allocation3 + $0x68] sm:$0xff] %vm867, %v848
    %882 = vst.msk [vmem:[#allocation3 + $0x70] sm:$0xff] %vm867, %v849
    %883 = vst.msk [vmem:[#allocation3 + $0x78] sm:$0xff] %vm867, %v850
    %884 = vst.msk [vmem:[#allocation3 + $0x80] sm:$0xff] %vm867, %v851
    %885 = vst.msk [vmem:[#allocation3 + $0x88] sm:$0xff] %vm867, %v852
    %886 = vst.msk [vmem:[#allocation3 + $0x90] sm:$0xff] %vm867, %v853
    %887 = vst.msk [vmem:[#allocation3 + $0x98] sm:$0xff] %vm867, %v854
    %888 = vst.msk [vmem:[#allocation3 + $0xa0] sm:$0xff] %vm867, %v855
    %889 = vst.msk [vmem:[#allocation3 + $0xa8] sm:$0xff] %vm867, %v856
    %890 = vst.msk [vmem:[#allocation3 + $0xb0] sm:$0xff] %vm867, %v857
    %891 = vst.msk [vmem:[#allocation3 + $0xb8] sm:$0xff] %vm867, %v858
    %892 = vst.msk [vmem:[#allocation3 + $0xc0] sm:$0xff] %vm867, %v859
    %893 = vst.msk [vmem:[#allocation3 + $0xc8] sm:$0xff] %vm867, %v860
    %894 = vst.msk [vmem:[#allocation3 + $0xd0] sm:$0xff] %vm867, %v861
    %895 = vst.msk [vmem:[#allocation3 + $0xd8] sm:$0xff] %vm867, %v862
    %896 = vst.msk [vmem:[#allocation3 + $0xe0] sm:$0xff] %vm867, %v863
    %897 = vst.msk [vmem:[#allocation3 + $0xe8] sm:$0xff] %vm867, %v864
    %898 = vst.msk [vmem:[#allocation3 + $0xf0] sm:$0xff] %vm867, %v865
    %899 = vst.msk [vmem:[#allocation3 + $0xf8] sm:$0xff] %vm867, %v866
    // Predicated region
    $region42: #{tpu_custom_call.1} parent=1 // pred_check
      %p900 = pneg %p77
    $region43: #{tpu_custom_call.1} parent=1 // pred_check_branch
      %902 = sbr.rel (%p900) target = $region45
    $region44: #{tpu_custom_call.1} parent=1 // pred_region
      %v903 = vld [vmem:[#allocation3] sm:$0xff]
      %v904 = vld [vmem:[#allocation3 + $0x8] sm:$0xff]
      %v905 = vld [vmem:[#allocation3 + $0x10] sm:$0xff]
      %v906 = vld [vmem:[#allocation3 + $0x18] sm:$0xff]
      %v907 = vld [vmem:[#allocation3 + $0x20] sm:$0xff]
      %v908 = vld [vmem:[#allocation3 + $0x28] sm:$0xff]
      %v909 = vld [vmem:[#allocation3 + $0x30] sm:$0xff]
      %v910 = vld [vmem:[#allocation3 + $0x38] sm:$0xff]
      %v911 = vld [vmem:[#allocation3 + $0x40] sm:$0xff]
      %v912 = vld [vmem:[#allocation3 + $0x48] sm:$0xff]
      %v913 = vld [vmem:[#allocation3 + $0x50] sm:$0xff]
      %v914 = vld [vmem:[#allocation3 + $0x58] sm:$0xff]
      %v915 = vld [vmem:[#allocation3 + $0x60] sm:$0xff]
      %v916 = vld [vmem:[#allocation3 + $0x68] sm:$0xff]
      %v917 = vld [vmem:[#allocation3 + $0x70] sm:$0xff]
      %v918 = vld [vmem:[#allocation3 + $0x78] sm:$0xff]
      %v919 = vld [vmem:[#allocation3 + $0x80] sm:$0xff]
      %v920 = vld [vmem:[#allocation3 + $0x88] sm:$0xff]
      %v921 = vld [vmem:[#allocation3 + $0x90] sm:$0xff]
      %v922 = vld [vmem:[#allocation3 + $0x98] sm:$0xff]
      %v923 = vld [vmem:[#allocation3 + $0xa0] sm:$0xff]
      %v924 = vld [vmem:[#allocation3 + $0xa8] sm:$0xff]
      %v925 = vld [vmem:[#allocation3 + $0xb0] sm:$0xff]
      %v926 = vld [vmem:[#allocation3 + $0xb8] sm:$0xff]
      %v927 = vld [vmem:[#allocation3 + $0xc0] sm:$0xff]
      %v928 = vld [vmem:[#allocation3 + $0xc8] sm:$0xff]
      %v929 = vld [vmem:[#allocation3 + $0xd0] sm:$0xff]
      %v930 = vld [vmem:[#allocation3 + $0xd8] sm:$0xff]
      %v931 = vld [vmem:[#allocation3 + $0xe0] sm:$0xff]
      %v932 = vld [vmem:[#allocation3 + $0xe8] sm:$0xff]
      %v933 = vld [vmem:[#allocation3 + $0xf0] sm:$0xff]
      %v934 = vld [vmem:[#allocation3 + $0xf8] sm:$0xff]
      %v935 = vadd.f32 %v903, 1.0
      %v936 = vadd.f32 %v904, 1.0
      %v937 = vadd.f32 %v905, 1.0
      %v938 = vadd.f32 %v906, 1.0
      %v939 = vadd.f32 %v907, 1.0
      %v940 = vadd.f32 %v908, 1.0
      %v941 = vadd.f32 %v909, 1.0
      %v942 = vadd.f32 %v910, 1.0
      %v943 = vadd.f32 %v911, 1.0
      %v944 = vadd.f32 %v912, 1.0
      %v945 = vadd.f32 %v913, 1.0
      %v946 = vadd.f32 %v914, 1.0
      %v947 = vadd.f32 %v915, 1.0
      %v948 = vadd.f32 %v916, 1.0
      %v949 = vadd.f32 %v917, 1.0
      %v950 = vadd.f32 %v918, 1.0
      %v951 = vadd.f32 %v919, 1.0
      %v952 = vadd.f32 %v920, 1.0
      %v953 = vadd.f32 %v921, 1.0
      %v954 = vadd.f32 %v922, 1.0
      %v955 = vadd.f32 %v923, 1.0
      %v956 = vadd.f32 %v924, 1.0
      %v957 = vadd.f32 %v925, 1.0
      %v958 = vadd.f32 %v926, 1.0
      %v959 = vadd.f32 %v927, 1.0
      %v960 = vadd.f32 %v928, 1.0
      %v961 = vadd.f32 %v929, 1.0
      %v962 = vadd.f32 %v930, 1.0
      %v963 = vadd.f32 %v931, 1.0
      %v964 = vadd.f32 %v932, 1.0
      %v965 = vadd.f32 %v933, 1.0
      %v966 = vadd.f32 %v934, 1.0
      %v967 = vrcp.pop %v935
      %v968 = vmul.f32 1.0, %v967
      %v969 = vrcp.pop %v936
      %v970 = vmul.f32 1.0, %v969
      %v971 = vrcp.pop %v937
      %v972 = vmul.f32 1.0, %v971
      %v973 = vrcp.pop %v938
      %v974 = vmul.f32 1.0, %v973
      %v975 = vrcp.pop %v939
      %v976 = vmul.f32 1.0, %v975
      %v977 = vrcp.pop %v940
      %v978 = vmul.f32 1.0, %v977
      %v979 = vrcp.pop %v941
      %v980 = vmul.f32 1.0, %v979
      %v981 = vrcp.pop %v942
      %v982 = vmul.f32 1.0, %v981
      %v983 = vrcp.pop %v943
      %v984 = vmul.f32 1.0, %v983
      %v985 = vrcp.pop %v944
      %v986 = vmul.f32 1.0, %v985
      %v987 = vrcp.pop %v945
      %v988 = vmul.f32 1.0, %v987
      %v989 = vrcp.pop %v946
      %v990 = vmul.f32 1.0, %v989
      %v991 = vrcp.pop %v947
      %v992 = vmul.f32 1.0, %v991
      %v993 = vrcp.pop %v948
      %v994 = vmul.f32 1.0, %v993
      %v995 = vrcp.pop %v949
      %v996 = vmul.f32 1.0, %v995
      %v997 = vrcp.pop %v950
      %v998 = vmul.f32 1.0, %v997
      %v999 = vrcp.pop %v951
      %v1000 = vmul.f32 1.0, %v999
      %v1001 = vrcp.pop %v952
      %v1002 = vmul.f32 1.0, %v1001
      %v1003 = vrcp.pop %v953
      %v1004 = vmul.f32 1.0, %v1003
      %v1005 = vrcp.pop %v954
      %v1006 = vmul.f32 1.0, %v1005
      %v1007 = vrcp.pop %v955
      %v1008 = vmul.f32 1.0, %v1007
      %v1009 = vrcp.pop %v956
      %v1010 = vmul.f32 1.0, %v1009
      %v1011 = vrcp.pop %v957
      %v1012 = vmul.f32 1.0, %v1011
      %v1013 = vrcp.pop %v958
      %v1014 = vmul.f32 1.0, %v1013
      %v1015 = vrcp.pop %v959
      %v1016 = vmul.f32 1.0, %v1015
      %v1017 = vrcp.pop %v960
      %v1018 = vmul.f32 1.0, %v1017
      %v1019 = vrcp.pop %v961
      %v1020 = vmul.f32 1.0, %v1019
      %v1021 = vrcp.pop %v962
      %v1022 = vmul.f32 1.0, %v1021
      %v1023 = vrcp.pop %v963
      %v1024 = vmul.f32 1.0, %v1023
      %v1025 = vrcp.pop %v964
      %v1026 = vmul.f32 1.0, %v1025
      %v1027 = vrcp.pop %v965
      %v1028 = vmul.f32 1.0, %v1027
      %v1029 = vrcp.pop %v966
      %v1030 = vmul.f32 1.0, %v1029
      %v1031 = vld [vmem:[#allocation2] sm:$0xff]
      %v1032 = vld [vmem:[#allocation2 + $0x8] sm:$0xff]
      %v1033 = vld [vmem:[#allocation2 + $0x10] sm:$0xff]
      %v1034 = vld [vmem:[#allocation2 + $0x18] sm:$0xff]
      %v1035 = vld [vmem:[#allocation2 + $0x20] sm:$0xff]
      %v1036 = vld [vmem:[#allocation2 + $0x28] sm:$0xff]
      %v1037 = vld [vmem:[#allocation2 + $0x30] sm:$0xff]
      %v1038 = vld [vmem:[#allocation2 + $0x38] sm:$0xff]
      %v1039 = vld [vmem:[#allocation2 + $0x40] sm:$0xff]
      %v1040 = vld [vmem:[#allocation2 + $0x48] sm:$0xff]
      %v1041 = vld [vmem:[#allocation2 + $0x50] sm:$0xff]
      %v1042 = vld [vmem:[#allocation2 + $0x58] sm:$0xff]
      %v1043 = vld [vmem:[#allocation2 + $0x60] sm:$0xff]
      %v1044 = vld [vmem:[#allocation2 + $0x68] sm:$0xff]
      %v1045 = vld [vmem:[#allocation2 + $0x70] sm:$0xff]
      %v1046 = vld [vmem:[#allocation2 + $0x78] sm:$0xff]
      %v1047 = vld [vmem:[#allocation2 + $0x80] sm:$0xff]
      %v1048 = vld [vmem:[#allocation2 + $0x88] sm:$0xff]
      %v1049 = vld [vmem:[#allocation2 + $0x90] sm:$0xff]
      %v1050 = vld [vmem:[#allocation2 + $0x98] sm:$0xff]
      %v1051 = vld [vmem:[#allocation2 + $0xa0] sm:$0xff]
      %v1052 = vld [vmem:[#allocation2 + $0xa8] sm:$0xff]
      %v1053 = vld [vmem:[#allocation2 + $0xb0] sm:$0xff]
      %v1054 = vld [vmem:[#allocation2 + $0xb8] sm:$0xff]
      %v1055 = vld [vmem:[#allocation2 + $0xc0] sm:$0xff]
      %v1056 = vld [vmem:[#allocation2 + $0xc8] sm:$0xff]
      %v1057 = vld [vmem:[#allocation2 + $0xd0] sm:$0xff]
      %v1058 = vld [vmem:[#allocation2 + $0xd8] sm:$0xff]
      %v1059 = vld [vmem:[#allocation2 + $0xe0] sm:$0xff]
      %v1060 = vld [vmem:[#allocation2 + $0xe8] sm:$0xff]
      %v1061 = vld [vmem:[#allocation2 + $0xf0] sm:$0xff]
      %v1062 = vld [vmem:[#allocation2 + $0xf8] sm:$0xff]
      %v1063 = vld [vmem:[#allocation9] sm:$0xf]
      %v1064 = vld [vmem:[#allocation9 + $0x4] sm:$0xf]
      %v1065 = vld [vmem:[#allocation9 + $0x8] sm:$0xf]
      %v1066 = vld [vmem:[#allocation9 + $0xc] sm:$0xf]
      %v1067 = vld [vmem:[#allocation9 + $0x10] sm:$0xf]
      %v1068 = vld [vmem:[#allocation9 + $0x14] sm:$0xf]
      %v1069 = vld [vmem:[#allocation9 + $0x18] sm:$0xf]
      %v1070 = vld [vmem:[#allocation9 + $0x1c] sm:$0xf]
      %v1071 = vld [vmem:[#allocation9 + $0x20] sm:$0xf]
      %v1072 = vld [vmem:[#allocation9 + $0x24] sm:$0xf]
      %v1073 = vld [vmem:[#allocation9 + $0x28] sm:$0xf]
      %v1074 = vld [vmem:[#allocation9 + $0x2c] sm:$0xf]
      %v1075 = vld [vmem:[#allocation9 + $0x30] sm:$0xf]
      %v1076 = vld [vmem:[#allocation9 + $0x34] sm:$0xf]
      %v1077 = vld [vmem:[#allocation9 + $0x38] sm:$0xf]
      %v1078 = vld [vmem:[#allocation9 + $0x3c] sm:$0xf]
      %v1079 = vld [vmem:[#allocation9 + $0x40] sm:$0xf]
      %v1080 = vld [vmem:[#allocation9 + $0x44] sm:$0xf]
      %v1081 = vld [vmem:[#allocation9 + $0x48] sm:$0xf]
      %v1082 = vld [vmem:[#allocation9 + $0x4c] sm:$0xf]
      %v1083 = vld [vmem:[#allocation9 + $0x50] sm:$0xf]
      %v1084 = vld [vmem:[#allocation9 + $0x54] sm:$0xf]
      %v1085 = vld [vmem:[#allocation9 + $0x58] sm:$0xf]
      %v1086 = vld [vmem:[#allocation9 + $0x5c] sm:$0xf]
      %v1087 = vld [vmem:[#allocation9 + $0x60] sm:$0xf]
      %v1088 = vld [vmem:[#allocation9 + $0x64] sm:$0xf]
      %v1089 = vld [vmem:[#allocation9 + $0x68] sm:$0xf]
      %v1090 = vld [vmem:[#allocation9 + $0x6c] sm:$0xf]
      %v1091 = vld [vmem:[#allocation9 + $0x70] sm:$0xf]
      %v1092 = vld [vmem:[#allocation9 + $0x74] sm:$0xf]
      %v1093 = vld [vmem:[#allocation9 + $0x78] sm:$0xf]
      %v1094 = vld [vmem:[#allocation9 + $0x7c] sm:$0xf]
      %v1095 = vunpack.c.l.bf16 %v1063
      %v1096 = vunpack.c.l.bf16 %v1064
      %v1097 = vunpack.c.l.bf16 %v1065
      %v1098 = vunpack.c.l.bf16 %v1066
      %v1099 = vunpack.c.l.bf16 %v1067
      %v1100 = vunpack.c.l.bf16 %v1068
      %v1101 = vunpack.c.l.bf16 %v1069
      %v1102 = vunpack.c.l.bf16 %v1070
      %v1103 = vunpack.c.l.bf16 %v1071
      %v1104 = vunpack.c.l.bf16 %v1072
      %v1105 = vunpack.c.l.bf16 %v1073
      %v1106 = vunpack.c.l.bf16 %v1074
      %v1107 = vunpack.c.l.bf16 %v1075
      %v1108 = vunpack.c.l.bf16 %v1076
      %v1109 = vunpack.c.l.bf16 %v1077
      %v1110 = vunpack.c.l.bf16 %v1078
      %v1111 = vunpack.c.l.bf16 %v1079
      %v1112 = vunpack.c.l.bf16 %v1080
      %v1113 = vunpack.c.l.bf16 %v1081
      %v1114 = vunpack.c.l.bf16 %v1082
      %v1115 = vunpack.c.l.bf16 %v1083
      %v1116 = vunpack.c.l.bf16 %v1084
      %v1117 = vunpack.c.l.bf16 %v1085
      %v1118 = vunpack.c.l.bf16 %v1086
      %v1119 = vunpack.c.l.bf16 %v1087
      %v1120 = vunpack.c.l.bf16 %v1088
      %v1121 = vunpack.c.l.bf16 %v1089
      %v1122 = vunpack.c.l.bf16 %v1090
      %v1123 = vunpack.c.l.bf16 %v1091
      %v1124 = vunpack.c.l.bf16 %v1092
      %v1125 = vunpack.c.l.bf16 %v1093
      %v1126 = vunpack.c.l.bf16 %v1094
      %v1127 = vadd.f32 %v1031, %v1095
      %v1128 = vadd.f32 %v1032, %v1096
      %v1129 = vadd.f32 %v1033, %v1097
      %v1130 = vadd.f32 %v1034, %v1098
      %v1131 = vadd.f32 %v1035, %v1099
      %v1132 = vadd.f32 %v1036, %v1100
      %v1133 = vadd.f32 %v1037, %v1101
      %v1134 = vadd.f32 %v1038, %v1102
      %v1135 = vadd.f32 %v1039, %v1103
      %v1136 = vadd.f32 %v1040, %v1104
      %v1137 = vadd.f32 %v1041, %v1105
      %v1138 = vadd.f32 %v1042, %v1106
      %v1139 = vadd.f32 %v1043, %v1107
      %v1140 = vadd.f32 %v1044, %v1108
      %v1141 = vadd.f32 %v1045, %v1109
      %v1142 = vadd.f32 %v1046, %v1110
      %v1143 = vadd.f32 %v1047, %v1111
      %v1144 = vadd.f32 %v1048, %v1112
      %v1145 = vadd.f32 %v1049, %v1113
      %v1146 = vadd.f32 %v1050, %v1114
      %v1147 = vadd.f32 %v1051, %v1115
      %v1148 = vadd.f32 %v1052, %v1116
      %v1149 = vadd.f32 %v1053, %v1117
      %v1150 = vadd.f32 %v1054, %v1118
      %v1151 = vadd.f32 %v1055, %v1119
      %v1152 = vadd.f32 %v1056, %v1120
      %v1153 = vadd.f32 %v1057, %v1121
      %v1154 = vadd.f32 %v1058, %v1122
      %v1155 = vadd.f32 %v1059, %v1123
      %v1156 = vadd.f32 %v1060, %v1124
      %v1157 = vadd.f32 %v1061, %v1125
      %v1158 = vadd.f32 %v1062, %v1126
      %1160 = vset.pattern.permute.xlu0 0
      %1161 = vperm.xlu0 %1160, %v968
      %v1162 = vpop.permute.xlu0 %1161
      %1165 = vset.pattern.permute.xlu0 0
      %1166 = vperm.xlu0 %1165, %v970
      %v1167 = vpop.permute.xlu0 %1166
      %1170 = vset.pattern.permute.xlu0 0
      %1171 = vperm.xlu0 %1170, %v972
      %v1172 = vpop.permute.xlu0 %1171
      %1175 = vset.pattern.permute.xlu0 0
      %1176 = vperm.xlu0 %1175, %v974
      %v1177 = vpop.permute.xlu0 %1176
      %1180 = vset.pattern.permute.xlu0 0
      %1181 = vperm.xlu0 %1180, %v976
      %v1182 = vpop.permute.xlu0 %1181
      %1185 = vset.pattern.permute.xlu0 0
      %1186 = vperm.xlu0 %1185, %v978
      %v1187 = vpop.permute.xlu0 %1186
      %1190 = vset.pattern.permute.xlu0 0
      %1191 = vperm.xlu0 %1190, %v980
      %v1192 = vpop.permute.xlu0 %1191
      %1195 = vset.pattern.permute.xlu0 0
      %1196 = vperm.xlu0 %1195, %v982
      %v1197 = vpop.permute.xlu0 %1196
      %1200 = vset.pattern.permute.xlu0 0
      %1201 = vperm.xlu0 %1200, %v984
      %v1202 = vpop.permute.xlu0 %1201
      %1205 = vset.pattern.permute.xlu0 0
      %1206 = vperm.xlu0 %1205, %v986
      %v1207 = vpop.permute.xlu0 %1206
      %1210 = vset.pattern.permute.xlu0 0
      %1211 = vperm.xlu0 %1210, %v988
      %v1212 = vpop.permute.xlu0 %1211
      %1215 = vset.pattern.permute.xlu0 0
      %1216 = vperm.xlu0 %1215, %v990
      %v1217 = vpop.permute.xlu0 %1216
      %1220 = vset.pattern.permute.xlu0 0
      %1221 = vperm.xlu0 %1220, %v992
      %v1222 = vpop.permute.xlu0 %1221
      %1225 = vset.pattern.permute.xlu0 0
      %1226 = vperm.xlu0 %1225, %v994
      %v1227 = vpop.permute.xlu0 %1226
      %1230 = vset.pattern.permute.xlu0 0
      %1231 = vperm.xlu0 %1230, %v996
      %v1232 = vpop.permute.xlu0 %1231
      %1235 = vset.pattern.permute.xlu0 0
      %1236 = vperm.xlu0 %1235, %v998
      %v1237 = vpop.permute.xlu0 %1236
      %1240 = vset.pattern.permute.xlu0 0
      %1241 = vperm.xlu0 %1240, %v1000
      %v1242 = vpop.permute.xlu0 %1241
      %1245 = vset.pattern.permute.xlu0 0
      %1246 = vperm.xlu0 %1245, %v1002
      %v1247 = vpop.permute.xlu0 %1246
      %1250 = vset.pattern.permute.xlu0 0
      %1251 = vperm.xlu0 %1250, %v1004
      %v1252 = vpop.permute.xlu0 %1251
      %1255 = vset.pattern.permute.xlu0 0
      %1256 = vperm.xlu0 %1255, %v1006
      %v1257 = vpop.permute.xlu0 %1256
      %1260 = vset.pattern.permute.xlu0 0
      %1261 = vperm.xlu0 %1260, %v1008
      %v1262 = vpop.permute.xlu0 %1261
      %1265 = vset.pattern.permute.xlu0 0
      %1266 = vperm.xlu0 %1265, %v1010
      %v1267 = vpop.permute.xlu0 %1266
      %1270 = vset.pattern.permute.xlu0 0
      %1271 = vperm.xlu0 %1270, %v1012
      %v1272 = vpop.permute.xlu0 %1271
      %1275 = vset.pattern.permute.xlu0 0
      %1276 = vperm.xlu0 %1275, %v1014
      %v1277 = vpop.permute.xlu0 %1276
      %1280 = vset.pattern.permute.xlu0 0
      %1281 = vperm.xlu0 %1280, %v1016
      %v1282 = vpop.permute.xlu0 %1281
      %1285 = vset.pattern.permute.xlu0 0
      %1286 = vperm.xlu0 %1285, %v1018
      %v1287 = vpop.permute.xlu0 %1286
      %1290 = vset.pattern.permute.xlu0 0
      %1291 = vperm.xlu0 %1290, %v1020
      %v1292 = vpop.permute.xlu0 %1291
      %1295 = vset.pattern.permute.xlu0 0
      %1296 = vperm.xlu0 %1295, %v1022
      %v1297 = vpop.permute.xlu0 %1296
      %1300 = vset.pattern.permute.xlu0 0
      %1301 = vperm.xlu0 %1300, %v1024
      %v1302 = vpop.permute.xlu0 %1301
      %1305 = vset.pattern.permute.xlu0 0
      %1306 = vperm.xlu0 %1305, %v1026
      %v1307 = vpop.permute.xlu0 %1306
      %1310 = vset.pattern.permute.xlu0 0
      %1311 = vperm.xlu0 %1310, %v1028
      %v1312 = vpop.permute.xlu0 %1311
      %1315 = vset.pattern.permute.xlu0 0
      %1316 = vperm.xlu0 %1315, %v1030
      %v1317 = vpop.permute.xlu0 %1316
      %v1319 = vmul.f32 %v1127, %v1162
      %v1320 = vmul.f32 %v1128, %v1167
      %v1321 = vmul.f32 %v1129, %v1172
      %v1322 = vmul.f32 %v1130, %v1177
      %v1323 = vmul.f32 %v1131, %v1182
      %v1324 = vmul.f32 %v1132, %v1187
      %v1325 = vmul.f32 %v1133, %v1192
      %v1326 = vmul.f32 %v1134, %v1197
      %v1327 = vmul.f32 %v1135, %v1202
      %v1328 = vmul.f32 %v1136, %v1207
      %v1329 = vmul.f32 %v1137, %v1212
      %v1330 = vmul.f32 %v1138, %v1217
      %v1331 = vmul.f32 %v1139, %v1222
      %v1332 = vmul.f32 %v1140, %v1227
      %v1333 = vmul.f32 %v1141, %v1232
      %v1334 = vmul.f32 %v1142, %v1237
      %v1335 = vmul.f32 %v1143, %v1242
      %v1336 = vmul.f32 %v1144, %v1247
      %v1337 = vmul.f32 %v1145, %v1252
      %v1338 = vmul.f32 %v1146, %v1257
      %v1339 = vmul.f32 %v1147, %v1262
      %v1340 = vmul.f32 %v1148, %v1267
      %v1341 = vmul.f32 %v1149, %v1272
      %v1342 = vmul.f32 %v1150, %v1277
      %v1343 = vmul.f32 %v1151, %v1282
      %v1344 = vmul.f32 %v1152, %v1287
      %v1345 = vmul.f32 %v1153, %v1292
      %v1346 = vmul.f32 %v1154, %v1297
      %v1347 = vmul.f32 %v1155, %v1302
      %v1348 = vmul.f32 %v1156, %v1307
      %v1349 = vmul.f32 %v1157, %v1312
      %v1350 = vmul.f32 %v1158, %v1317
      %v1351 = vpack.c.bf16 %v1320, %v1319
      %v1352 = vpack.c.bf16 %v1322, %v1321
      %v1353 = vpack.c.bf16 %v1324, %v1323
      %v1354 = vpack.c.bf16 %v1326, %v1325
      %v1355 = vpack.c.bf16 %v1328, %v1327
      %v1356 = vpack.c.bf16 %v1330, %v1329
      %v1357 = vpack.c.bf16 %v1332, %v1331
      %v1358 = vpack.c.bf16 %v1334, %v1333
      %v1359 = vpack.c.bf16 %v1336, %v1335
      %v1360 = vpack.c.bf16 %v1338, %v1337
      %v1361 = vpack.c.bf16 %v1340, %v1339
      %v1362 = vpack.c.bf16 %v1342, %v1341
      %v1363 = vpack.c.bf16 %v1344, %v1343
      %v1364 = vpack.c.bf16 %v1346, %v1345
      %v1365 = vpack.c.bf16 %v1348, %v1347
      %v1366 = vpack.c.bf16 %v1350, %v1349
      %v1367 = vld [vmem:[#allocation10] sm:$0xf]
      %v1368 = vld [vmem:[#allocation10 + $0x4] sm:$0xf]
      %v1369 = vld [vmem:[#allocation10 + $0x8] sm:$0xf]
      %v1370 = vld [vmem:[#allocation10 + $0xc] sm:$0xf]
      %v1371 = vld [vmem:[#allocation10 + $0x10] sm:$0xf]
      %v1372 = vld [vmem:[#allocation10 + $0x14] sm:$0xf]
      %v1373 = vld [vmem:[#allocation10 + $0x18] sm:$0xf]
      %v1374 = vld [vmem:[#allocation10 + $0x1c] sm:$0xf]
      %v1375 = vld [vmem:[#allocation10 + $0x20] sm:$0xf]
      %v1376 = vld [vmem:[#allocation10 + $0x24] sm:$0xf]
      %v1377 = vld [vmem:[#allocation10 + $0x28] sm:$0xf]
      %v1378 = vld [vmem:[#allocation10 + $0x2c] sm:$0xf]
      %v1379 = vld [vmem:[#allocation10 + $0x30] sm:$0xf]
      %v1380 = vld [vmem:[#allocation10 + $0x34] sm:$0xf]
      %v1381 = vld [vmem:[#allocation10 + $0x38] sm:$0xf]
      %v1382 = vld [vmem:[#allocation10 + $0x3c] sm:$0xf]
      %v1383 = vld [vmem:[%s4] sm:$0x1]
      %v1385 = vlaneseq
      %v1386 = vshrl.u32 %v1385, 7
      %v1387 = vsub.s32 0, %v1386
      %v1388 = vrot.slane %v1383, %v1387
      %v1406 = vunpack.c.l.b16 %v1367
      %v1407 = vunpack.c.l.b16 %v1368
      %v1408 = vunpack.c.l.b16 %v1369
      %v1409 = vunpack.c.l.b16 %v1370
      %v1410 = vunpack.c.l.b16 %v1371
      %v1411 = vunpack.c.l.b16 %v1372
      %v1412 = vunpack.c.l.b16 %v1373
      %v1413 = vunpack.c.l.b16 %v1374
      %v1414 = vunpack.c.l.b16 %v1375
      %v1415 = vunpack.c.l.b16 %v1376
      %v1416 = vunpack.c.l.b16 %v1377
      %v1417 = vunpack.c.l.b16 %v1378
      %v1418 = vunpack.c.l.b16 %v1379
      %v1419 = vunpack.c.l.b16 %v1380
      %v1420 = vunpack.c.l.b16 %v1381
      %v1421 = vunpack.c.l.b16 %v1382
      %v1422 = vpack.c.b16 %v1407, %v1406
      %v1423 = vpack.c.b16 %v1409, %v1408
      %v1424 = vpack.c.b16 %v1411, %v1410
      %v1425 = vpack.c.b16 %v1413, %v1412
      %v1426 = vpack.c.b16 %v1415, %v1414
      %v1427 = vpack.c.b16 %v1417, %v1416
      %v1428 = vpack.c.b16 %v1419, %v1418
      %v1429 = vpack.c.b16 %v1421, %v1420
      %1438 = vmatprep.subr.bf16.mxu0 0
      %1439 = vmatpush1.bf16.msra.mxu0 %v1422
      %1440 = vmatprep.subr.bf16.mxu0 0
      %1441 = vmatpush1.bf16.msra.mxu0 %v1423
      %1442 = vmatprep.subr.bf16.mxu0 0
      %1443 = vmatpush1.bf16.msra.mxu0 %v1424
      %1444 = vmatprep.subr.bf16.mxu0 0
      %1445 = vmatpush1.bf16.msra.mxu0 %v1425
      %1446 = vmatprep.subr.bf16.mxu0 0
      %1447 = vmatpush1.bf16.msra.mxu0 %v1426
      %1448 = vmatprep.subr.bf16.mxu0 0
      %1449 = vmatpush1.bf16.msra.mxu0 %v1427
      %1450 = vmatprep.subr.bf16.mxu0 0
      %1451 = vmatpush1.bf16.msra.mxu0 %v1428
      %1452 = vmatprep.subr.bf16.mxu0 0
      %1453 = vmatpush1.bf16.msra.mxu0 %v1429
      %1454 = vmatprep.subr.bf16.mxu0 0
      %1455 = vmatpush1.bf16.msra.mxu0 0
      %1456 = vmatprep.subr.bf16.mxu0 0
      %1457 = vmatpush1.bf16.msra.mxu0 0
      %1458 = vmatprep.subr.bf16.mxu0 0
      %1459 = vmatpush1.bf16.msra.mxu0 0
      %1460 = vmatprep.subr.bf16.mxu0 0
      %1461 = vmatpush1.bf16.msra.mxu0 0
      %1462 = vmatprep.subr.bf16.mxu0 0
      %1463 = vmatpush1.bf16.msra.mxu0 0
      %1464 = vmatprep.subr.bf16.mxu0 0
      %1465 = vmatpush1.bf16.msra.mxu0 0
      %1466 = vmatprep.subr.bf16.mxu0 0
      %1467 = vmatpush1.bf16.msra.mxu0 0
      %1468 = vmatprep.subr.bf16.mxu0 0
      %1469 = vmatpush1.bf16.msra.mxu0 0
      %1470 = vmatprep.mubr.bf16.mxu0 0
      %1471 = vmatmul.mubr.bf16.gmra.mrb[0].mxu0 %v1351
      %v1472 = vpop.f32.mrb[0].mxu0
      %v1473 = vadd.f32 %v1388, %v1472
      %v1474 = vpop.f32.mrb[0].mxu0
      %v1475 = vpop.f32.mrb[0].mxu0
      %v1476 = vadd.f32 %v1388, %v1475
      %v1477 = vpop.f32.mrb[0].mxu0
      %1478 = vmatprep.mubr.bf16.mxu0 0
      %1479 = vmatmul.mubr.bf16.gmra.mrb[0].mxu0 %v1352
      %v1480 = vpop.f32.mrb[0].mxu0
      %v1481 = vadd.f32 %v1388, %v1480
      %v1482 = vpop.f32.mrb[0].mxu0
      %v1483 = vpop.f32.mrb[0].mxu0
      %v1484 = vadd.f32 %v1388, %v1483
      %v1485 = vpop.f32.mrb[0].mxu0
      %1486 = vmatprep.mubr.bf16.mxu0 0
      %1487 = vmatmul.mubr.bf16.gmra.mrb[0].mxu0 %v1353
      %v1488 = vpop.f32.mrb[0].mxu0
      %v1489 = vadd.f32 %v1388, %v1488
      %v1490 = vpop.f32.mrb[0].mxu0
      %v1491 = vpop.f32.mrb[0].mxu0
      %v1492 = vadd.f32 %v1388, %v1491
      %v1493 = vpop.f32.mrb[0].mxu0
      %1494 = vmatprep.mubr.bf16.mxu0 0
      %1495 = vmatmul.mubr.bf16.gmra.mrb[0].mxu0 %v1354
      %v1496 = vpop.f32.mrb[0].mxu0
      %v1497 = vadd.f32 %v1388, %v1496
      %v1498 = vpop.f32.mrb[0].mxu0
      %v1499 = vpop.f32.mrb[0].mxu0
      %v1500 = vadd.f32 %v1388, %v1499
      %v1501 = vpop.f32.mrb[0].mxu0
      %1502 = vmatprep.mubr.bf16.mxu0 0
      %1503 = vmatmul.mubr.bf16.gmra.mrb[0].mxu0 %v1355
      %v1504 = vpop.f32.mrb[0].mxu0
      %v1505 = vadd.f32 %v1388, %v1504
      %v1506 = vpop.f32.mrb[0].mxu0
      %v1507 = vpop.f32.mrb[0].mxu0
      %v1508 = vadd.f32 %v1388, %v1507
      %v1509 = vpop.f32.mrb[0].mxu0
      %1510 = vmatprep.mubr.bf16.mxu0 0
      %1511 = vmatmul.mubr.bf16.gmra.mrb[0].mxu0 %v1356
      %v1512 = vpop.f32.mrb[0].mxu0
      %v1513 = vadd.f32 %v1388, %v1512
      %v1514 = vpop.f32.mrb[0].mxu0
      %v1515 = vpop.f32.mrb[0].mxu0
      %v1516 = vadd.f32 %v1388, %v1515
      %v1517 = vpop.f32.mrb[0].mxu0
      %1518 = vmatprep.mubr.bf16.mxu0 0
      %1519 = vmatmul.mubr.bf16.gmra.mrb[0].mxu0 %v1357
      %v1520 = vpop.f32.mrb[0].mxu0
      %v1521 = vadd.f32 %v1388, %v1520
      %v1522 = vpop.f32.mrb[0].mxu0
      %v1523 = vpop.f32.mrb[0].mxu0
      %v1524 = vadd.f32 %v1388, %v1523
      %v1525 = vpop.f32.mrb[0].mxu0
      %1526 = vmatprep.mubr.bf16.mxu0 0
      %1527 = vmatmul.mubr.bf16.gmra.mrb[0].mxu0 %v1358
      %v1528 = vpop.f32.mrb[0].mxu0
      %v1529 = vadd.f32 %v1388, %v1528
      %v1530 = vpop.f32.mrb[0].mxu0
      %v1531 = vpop.f32.mrb[0].mxu0
      %v1532 = vadd.f32 %v1388, %v1531
      %v1533 = vpop.f32.mrb[0].mxu0
      %1534 = vmatprep.mubr.bf16.mxu0 0
      %1535 = vmatmul.mubr.bf16.gmra.mrb[0].mxu0 %v1359
      %v1536 = vpop.f32.mrb[0].mxu0
      %v1537 = vadd.f32 %v1388, %v1536
      %v1538 = vpop.f32.mrb[0].mxu0
      %v1539 = vpop.f32.mrb[0].mxu0
      %v1540 = vadd.f32 %v1388, %v1539
      %v1541 = vpop.f32.mrb[0].mxu0
      %1542 = vmatprep.mubr.bf16.mxu0 0
      %1543 = vmatmul.mubr.bf16.gmra.mrb[0].mxu0 %v1360
      %v1544 = vpop.f32.mrb[0].mxu0
      %v1545 = vadd.f32 %v1388, %v1544
      %v1546 = vpop.f32.mrb[0].mxu0
      %v1547 = vpop.f32.mrb[0].mxu0
      %v1548 = vadd.f32 %v1388, %v1547
      %v1549 = vpop.f32.mrb[0].mxu0
      %1550 = vmatprep.mubr.bf16.mxu0 0
      %1551 = vmatmul.mubr.bf16.gmra.mrb[0].mxu0 %v1361
      %v1552 = vpop.f32.mrb[0].mxu0
      %v1553 = vadd.f32 %v1388, %v1552
      %v1554 = vpop.f32.mrb[0].mxu0
      %v1555 = vpop.f32.mrb[0].mxu0
      %v1556 = vadd.f32 %v1388, %v1555
      %v1557 = vpop.f32.mrb[0].mxu0
      %1558 = vmatprep.mubr.bf16.mxu0 0
      %1559 = vmatmul.mubr.bf16.gmra.mrb[0].mxu0 %v1362
      %v1560 = vpop.f32.mrb[0].mxu0
      %v1561 = vadd.f32 %v1388, %v1560
      %v1562 = vpop.f32.mrb[0].mxu0
      %v1563 = vpop.f32.mrb[0].mxu0
      %v1564 = vadd.f32 %v1388, %v1563
      %v1565 = vpop.f32.mrb[0].mxu0
      %1566 = vmatprep.mubr.bf16.mxu0 0
      %1567 = vmatmul.mubr.bf16.gmra.mrb[0].mxu0 %v1363
      %v1568 = vpop.f32.mrb[0].mxu0
      %v1569 = vadd.f32 %v1388, %v1568
      %v1570 = vpop.f32.mrb[0].mxu0
      %v1571 = vpop.f32.mrb[0].mxu0
      %v1572 = vadd.f32 %v1388, %v1571
      %v1573 = vpop.f32.mrb[0].mxu0
      %1574 = vmatprep.mubr.bf16.mxu0 0
      %1575 = vmatmul.mubr.bf16.gmra.mrb[0].mxu0 %v1364
      %v1576 = vpop.f32.mrb[0].mxu0
      %v1577 = vadd.f32 %v1388, %v1576
      %v1578 = vpop.f32.mrb[0].mxu0
      %v1579 = vpop.f32.mrb[0].mxu0
      %v1580 = vadd.f32 %v1388, %v1579
      %v1581 = vpop.f32.mrb[0].mxu0
      %1582 = vmatprep.mubr.bf16.mxu0 0
      %1583 = vmatmul.mubr.bf16.gmra.mrb[0].mxu0 %v1365
      %v1584 = vpop.f32.mrb[0].mxu0
      %v1585 = vadd.f32 %v1388, %v1584
      %v1586 = vpop.f32.mrb[0].mxu0
      %v1587 = vpop.f32.mrb[0].mxu0
      %v1588 = vadd.f32 %v1388, %v1587
      %v1589 = vpop.f32.mrb[0].mxu0
      %1590 = vmatprep.mubr.bf16.mxu0 0
      %1591 = vmatmul.mubr.bf16.gmra.mrb[0].mxu0 %v1366
      %v1592 = vpop.f32.mrb[0].mxu0
      %v1593 = vadd.f32 %v1388, %v1592
      %v1594 = vpop.f32.mrb[0].mxu0
      %v1595 = vpop.f32.mrb[0].mxu0
      %v1596 = vadd.f32 %v1388, %v1595
      %v1597 = vpop.f32.mrb[0].mxu0
      %1598 = vdwg.mxu0
      %v1599 = vmax.f32 %v1473, 0.0
      %v1600 = vmax.f32 %v1476, 0.0
      %v1601 = vmax.f32 %v1481, 0.0
      %v1602 = vmax.f32 %v1484, 0.0
      %v1603 = vmax.f32 %v1489, 0.0
      %v1604 = vmax.f32 %v1492, 0.0
      %v1605 = vmax.f32 %v1497, 0.0
      %v1606 = vmax.f32 %v1500, 0.0
      %v1607 = vmax.f32 %v1505, 0.0
      %v1608 = vmax.f32 %v1508, 0.0
      %v1609 = vmax.f32 %v1513, 0.0
      %v1610 = vmax.f32 %v1516, 0.0
      %v1611 = vmax.f32 %v1521, 0.0
      %v1612 = vmax.f32 %v1524, 0.0
      %v1613 = vmax.f32 %v1529, 0.0
      %v1614 = vmax.f32 %v1532, 0.0
      %v1615 = vmax.f32 %v1537, 0.0
      %v1616 = vmax.f32 %v1540, 0.0
      %v1617 = vmax.f32 %v1545, 0.0
      %v1618 = vmax.f32 %v1548, 0.0
      %v1619 = vmax.f32 %v1553, 0.0
      %v1620 = vmax.f32 %v1556, 0.0
      %v1621 = vmax.f32 %v1561, 0.0
      %v1622 = vmax.f32 %v1564, 0.0
      %v1623 = vmax.f32 %v1569, 0.0
      %v1624 = vmax.f32 %v1572, 0.0
      %v1625 = vmax.f32 %v1577, 0.0
      %v1626 = vmax.f32 %v1580, 0.0
      %v1627 = vmax.f32 %v1585, 0.0
      %v1628 = vmax.f32 %v1588, 0.0
      %v1629 = vmax.f32 %v1593, 0.0
      %v1630 = vmax.f32 %v1596, 0.0
      %v1631 = vpack.c.bf16 %v1600, %v1599
      %v1632 = vpack.c.bf16 %v1602, %v1601
      %v1633 = vpack.c.bf16 %v1604, %v1603
      %v1634 = vpack.c.bf16 %v1606, %v1605
      %v1635 = vpack.c.bf16 %v1608, %v1607
      %v1636 = vpack.c.bf16 %v1610, %v1609
      %v1637 = vpack.c.bf16 %v1612, %v1611
      %v1638 = vpack.c.bf16 %v1614, %v1613
      %v1639 = vpack.c.bf16 %v1616, %v1615
      %v1640 = vpack.c.bf16 %v1618, %v1617
      %v1641 = vpack.c.bf16 %v1620, %v1619
      %v1642 = vpack.c.bf16 %v1622, %v1621
      %v1643 = vpack.c.bf16 %v1624, %v1623
      %v1644 = vpack.c.bf16 %v1626, %v1625
      %v1645 = vpack.c.bf16 %v1628, %v1627
      %v1646 = vpack.c.bf16 %v1630, %v1629
      %v1663 = vunpack.c.l.b16 %v1631
      %v1664 = vunpack.c.h.b16 %v1631
      %v1665 = vunpack.c.l.b16 %v1632
      %v1666 = vunpack.c.h.b16 %v1632
      %v1667 = vunpack.c.l.b16 %v1633
      %v1668 = vunpack.c.h.b16 %v1633
      %v1669 = vunpack.c.l.b16 %v1634
      %v1670 = vunpack.c.h.b16 %v1634
      %v1671 = vunpack.c.l.b16 %v1635
      %v1672 = vunpack.c.h.b16 %v1635
      %v1673 = vunpack.c.l.b16 %v1636
      %v1674 = vunpack.c.h.b16 %v1636
      %v1675 = vunpack.c.l.b16 %v1637
      %v1676 = vunpack.c.h.b16 %v1637
      %v1677 = vunpack.c.l.b16 %v1638
      %v1678 = vunpack.c.h.b16 %v1638
      %v1679 = vunpack.c.l.b16 %v1639
      %v1680 = vunpack.c.h.b16 %v1639
      %v1681 = vunpack.c.l.b16 %v1640
      %v1682 = vunpack.c.h.b16 %v1640
      %v1683 = vunpack.c.l.b16 %v1641
      %v1684 = vunpack.c.h.b16 %v1641
      %v1685 = vunpack.c.l.b16 %v1642
      %v1686 = vunpack.c.h.b16 %v1642
      %v1687 = vunpack.c.l.b16 %v1643
      %v1688 = vunpack.c.h.b16 %v1643
      %v1689 = vunpack.c.l.b16 %v1644
      %v1690 = vunpack.c.h.b16 %v1644
      %v1691 = vunpack.c.l.b16 %v1645
      %v1692 = vunpack.c.h.b16 %v1645
      %v1693 = vunpack.c.l.b16 %v1646
      %v1694 = vunpack.c.h.b16 %v1646
      %v1695 = vpack.c.b16 %v1663, %v1663
      %v1696 = vpack.c.b16 %v1664, %v1664
      %v1697 = vpack.c.b16 %v1665, %v1665
      %v1698 = vpack.c.b16 %v1666, %v1666
      %v1699 = vpack.c.b16 %v1667, %v1667
      %v1700 = vpack.c.b16 %v1668, %v1668
      %v1701 = vpack.c.b16 %v1669, %v1669
      %v1702 = vpack.c.b16 %v1670, %v1670
      %v1703 = vpack.c.b16 %v1671, %v1671
      %v1704 = vpack.c.b16 %v1672, %v1672
      %v1705 = vpack.c.b16 %v1673, %v1673
      %v1706 = vpack.c.b16 %v1674, %v1674
      %v1707 = vpack.c.b16 %v1675, %v1675
      %v1708 = vpack.c.b16 %v1676, %v1676
      %v1709 = vpack.c.b16 %v1677, %v1677
      %v1710 = vpack.c.b16 %v1678, %v1678
      %v1711 = vpack.c.b16 %v1679, %v1679
      %v1712 = vpack.c.b16 %v1680, %v1680
      %v1713 = vpack.c.b16 %v1681, %v1681
      %v1714 = vpack.c.b16 %v1682, %v1682
      %v1715 = vpack.c.b16 %v1683, %v1683
      %v1716 = vpack.c.b16 %v1684, %v1684
      %v1717 = vpack.c.b16 %v1685, %v1685
      %v1718 = vpack.c.b16 %v1686, %v1686
      %v1719 = vpack.c.b16 %v1687, %v1687
      %v1720 = vpack.c.b16 %v1688, %v1688
      %v1721 = vpack.c.b16 %v1689, %v1689
      %v1722 = vpack.c.b16 %v1690, %v1690
      %v1723 = vpack.c.b16 %v1691, %v1691
      %v1724 = vpack.c.b16 %v1692, %v1692
      %v1725 = vpack.c.b16 %v1693, %v1693
      %v1726 = vpack.c.b16 %v1694, %v1694
      %1759 = vst [vmem:[#allocation12] sm:$0xf] %v1695
      %1760 = vst [vmem:[#allocation12 + $0x4] sm:$0xf] %v1696
      %1761 = vst [vmem:[#allocation12 + $0x8] sm:$0xf] %v1697
      %1762 = vst [vmem:[#allocation12 + $0xc] sm:$0xf] %v1698
      %1763 = vst [vmem:[#allocation12 + $0x10] sm:$0xf] %v1699
      %1764 = vst [vmem:[#allocation12 + $0x14] sm:$0xf] %v1700
      %1765 = vst [vmem:[#allocation12 + $0x18] sm:$0xf] %v1701
      %1766 = vst [vmem:[#allocation12 + $0x1c] sm:$0xf] %v1702
      %1767 = vst [vmem:[#allocation12 + $0x20] sm:$0xf] %v1703
      %1768 = vst [vmem:[#allocation12 + $0x24] sm:$0xf] %v1704
      %1769 = vst [vmem:[#allocation12 + $0x28] sm:$0xf] %v1705
      %1770 = vst [vmem:[#allocation12 + $0x2c] sm:$0xf] %v1706
      %1771 = vst [vmem:[#allocation12 + $0x30] sm:$0xf] %v1707
      %1772 = vst [vmem:[#allocation12 + $0x34] sm:$0xf] %v1708
      %1773 = vst [vmem:[#allocation12 + $0x38] sm:$0xf] %v1709
      %1774 = vst [vmem:[#allocation12 + $0x3c] sm:$0xf] %v1710
      %1775 = vst [vmem:[#allocation12 + $0x40] sm:$0xf] %v1711
      %1776 = vst [vmem:[#allocation12 + $0x44] sm:$0xf] %v1712
      %1777 = vst [vmem:[#allocation12 + $0x48] sm:$0xf] %v1713
      %1778 = vst [vmem:[#allocation12 + $0x4c] sm:$0xf] %v1714
      %1779 = vst [vmem:[#allocation12 + $0x50] sm:$0xf] %v1715
      %1780 = vst [vmem:[#allocation12 + $0x54] sm:$0xf] %v1716
      %1781 = vst [vmem:[#allocation12 + $0x58] sm:$0xf] %v1717
      %1782 = vst [vmem:[#allocation12 + $0x5c] sm:$0xf] %v1718
      %1783 = vst [vmem:[#allocation12 + $0x60] sm:$0xf] %v1719
      %1784 = vst [vmem:[#allocation12 + $0x64] sm:$0xf] %v1720
      %1785 = vst [vmem:[#allocation12 + $0x68] sm:$0xf] %v1721
      %1786 = vst [vmem:[#allocation12 + $0x6c] sm:$0xf] %v1722
      %1787 = vst [vmem:[#allocation12 + $0x70] sm:$0xf] %v1723
      %1788 = vst [vmem:[#allocation12 + $0x74] sm:$0xf] %v1724
      %1789 = vst [vmem:[#allocation12 + $0x78] sm:$0xf] %v1725
      %1790 = vst [vmem:[#allocation12 + $0x7c] sm:$0xf] %v1726
    $region45: #{tpu_custom_call.1} parent=1 // pred_fallthru
      _
    // Predicated region
    $region46: #{tpu_custom_call.1} parent=1 // pred_check
      _
    $region47: #{tpu_custom_call.1} parent=1 // pred_check_branch
      %1792 = sbr.rel (0) target = $region49
    $region48: #{tpu_custom_call.1} parent=1 // pred_region
      %s1794 = ssub.s32 2048, 2048
      %1795 = vsyncadd [#allocation6], %s1794
      %s1796 = sshll.u32 [#allocation12], 4
      %s1797 = int_to_ptr.vmem [resolvable:$true] %s1796
      %1802 = dma.vmem_to_hbm [thread:$0]  %s1797, 2048, %s5, [#allocation6], 64, 64, 4
    $region49: #{tpu_custom_call.1} parent=1 // pred_fallthru
      _
    // Predicated region
    $region50: #{tpu_custom_call.1} parent=1 // pred_check
      _
    $region51: #{tpu_custom_call.1} parent=1 // pred_check_branch
      %1804 = sbr.rel (0) target = $region53
    $region52: #{tpu_custom_call.1} parent=1 // pred_region
      %1805 = dma.done [#allocation6], 2048
    $region53: #{tpu_custom_call.1} parent=1 // pred_fallthru
      _
    %1806 = vsyncpa [#allocation5], 1
    %1807 = vsyncpa [#allocation8], 1
    %1808 = vsyncpa [#allocation11], 1
    %1809 = vsyncpa [#allocation6], 1

</llo_original>
